<compile_context>
chip_gen: v7x
topology: tpu7x:2x2x1
jax: 0.10.0
libtpu: 0.0.40
codegen_flags: <defaults>
</compile_context>

<pallas_src>
import math
import functools

import jax
import jax.numpy as jnp
from jax import lax
from jax.experimental import pallas as pl
from jax.experimental.pallas import tpu as pltpu

_NEG_INF = -1e30  # finite "minus infinity" for the running max (avoids inf-inf NaNs)


def _self_attention_kernel(x_q_ref, x_kv_ref,
                           w_q_ref, b_q_ref,
                           w_kv_ref, b_kv_ref,
                           w_out_ref, b_out_ref,
                           o_ref,
                           q_scratch, acc_scratch, m_scratch, l_scratch,
                           *, n_heads, d_head, block_q, block_k, causal):
    # x_q_ref:   (1, tq, D)       query-tile rows of x
    # x_kv_ref:  (1, tk, D)       kv-tile rows of x
    # w_q_ref:   (D, D)           Q weight, pre-transposed (in-dim first)
    # b_q_ref:   (1, D)
    # w_kv_ref:  (D, 2D)          fused K|V weight, pre-transposed
    # b_kv_ref:  (1, 2D)
    # w_out_ref: (H, dh, D)       out_proj weight, pre-transposed + head-split
    # b_out_ref: (1, D)
    # o_ref:     (1, tq, D)
    # scratch:   q/acc (H, tq, dh) f32, m/l (H, tq, 1) f32
    D = n_heads * d_head
    qi = pl.program_id(1)
    ki = pl.program_id(2)
    n_k = pl.num_programs(2)
    scale = 1.0 / math.sqrt(d_head)

    @pl.when(ki == 0)
    def _init():
        m_scratch[...] = jnp.full(m_scratch.shape, _NEG_INF, dtype=jnp.float32)
        l_scratch[...] = jnp.zeros(l_scratch.shape, dtype=jnp.float32)
        acc_scratch[...] = jnp.zeros(acc_scratch.shape, dtype=jnp.float32)
        # One wide (tq, D) x (D, D) projection; softmax scale folded into Q.
        xq = x_q_ref[0]
        q = jnp.dot(xq, w_q_ref[...], preferred_element_type=jnp.float32)
        q = (q + b_q_ref[...].astype(jnp.float32)) * scale
        for h in range(n_heads):
            q_scratch[h] = q[:, h * d_head:(h + 1) * d_head]

    q_start = qi * block_q
    k_start = ki * block_k

    def _compute():
        # Fused K|V projection for this kv tile: one (tk, D) x (D, 2D) matmul.
        xkv = x_kv_ref[0]
        kv = jnp.dot(xkv, w_kv_ref[...], preferred_element_type=jnp.float32)
        kv = kv + b_kv_ref[...].astype(jnp.float32)

        if causal:
            # Built once per grid step (hoisted out of the head loop), from the
            # global row/col indices of this (q-tile, kv-tile) pair.
            rows = q_start + lax.broadcasted_iota(jnp.int32, (block_q, block_k), 0)
            cols = k_start + lax.broadcasted_iota(jnp.int32, (block_q, block_k), 1)
            bias = jnp.where(cols > rows, -jnp.inf, 0.0).astype(jnp.float32)
        else:
            bias = None

        # Per-head attention (heads are few; loop is unrolled at trace time).
        for h in range(n_heads):
            k_h = kv[:, h * d_head:(h + 1) * d_head]           # (tk, dh)
            v_h = kv[:, D + h * d_head:D + (h + 1) * d_head]   # (tk, dh)
            q_h = q_scratch[h]                                  # (tq, dh)

            # Q @ K^T expressed directly as a contraction over d_head (no .T).
            s = lax.dot_general(q_h, k_h, (((1,), (1,)), ((), ())),
                                preferred_element_type=jnp.float32)  # (tq, tk)
            if bias is not None:
                s = s + bias

            m_prev = m_scratch[h]                               # (tq, 1)
            l_prev = l_scratch[h]                               # (tq, 1)
            m_new = jnp.maximum(m_prev, jnp.max(s, axis=-1, keepdims=True))
            alpha = jnp.exp(m_prev - m_new)
            p = jnp.exp(s - m_new)                              # (tq, tk)
            l_scratch[h] = alpha * l_prev + jnp.sum(p, axis=-1, keepdims=True)
            m_scratch[h] = m_new
            # TODO(synk): for bf16 inputs, cast p/v_h to bf16 here to feed the
            # MXU at full rate while keeping the f32 accumulator.
            acc_scratch[h] = alpha * acc_scratch[h] + jnp.dot(
                p, v_h, preferred_element_type=jnp.float32)

    if causal:
        # Skip kv tiles that lie entirely above the diagonal for this q tile
        # (no row in the q tile attends to any column of this kv tile).
        pl.when(k_start < q_start + block_q)(_compute)
    else:
        _compute()

    @pl.when(ki == n_k - 1)
    def _finalize():
        # Normalize each head by its softmax denominator, then apply out_proj
        # decomposed over head column blocks: out = sum_h head_h @ W_out[h] + b.
        out = None
        for h in range(n_heads):
            inv_l = pl.reciprocal(l_scratch[h], approx=False)
            head = acc_scratch[h] * inv_l                       # (tq, dh)
            partial = jnp.dot(head, w_out_ref[h],
                              preferred_element_type=jnp.float32)  # (tq, D)
            out = partial if out is None else out + partial
        out = out + b_out_ref[...].astype(jnp.float32)
        o_ref[0] = out.astype(o_ref.dtype)


def self_attention_pallas(x, w_in, b_in, w_out, b_out, n_heads,
                          causal_mask=False, block_q=None, block_k=None):
    """x: (B, S, D); w_in: (3D, D); b_in: (3D,); w_out: (D, D); b_out: (D,)."""
    B, S, D = x.shape
    d_head = D // n_heads
    assert n_heads * d_head == D, "d_embed must be divisible by n_heads"
    if block_q is None:
        block_q = min(S, 256)
    if block_k is None:
        block_k = min(S, 256)
    assert S % block_q == 0 and S % block_k == 0, "seq_len must divide tiles"

    # Pre-transpose / split parameters on the host so the kernel never calls
    # .T on a weight (PyTorch nn.Linear stores W as [out, in]; y = x @ W.T + b).
    w_q_t = jnp.transpose(w_in[:D, :])                        # (D, D)
    w_kv_t = jnp.transpose(w_in[D:, :])                       # (D, 2D)  fused K|V
    b_q_r = b_in[:D].reshape(1, D)
    b_kv_r = b_in[D:].reshape(1, 2 * D)
    w_out_t = jnp.transpose(w_out).reshape(n_heads, d_head, D)  # (H, dh, D)
    b_out_r = b_out.reshape(1, D)

    kernel = functools.partial(_self_attention_kernel,
                               n_heads=n_heads, d_head=d_head,
                               block_q=block_q, block_k=block_k,
                               causal=bool(causal_mask))

    grid = (B, S // block_q, S // block_k)

    return pl.pallas_call(
        kernel,
        out_shape=jax.ShapeDtypeStruct((B, S, D), x.dtype),
        grid_spec=pltpu.PrefetchScalarGridSpec(
            num_scalar_prefetch=0,
            grid=grid,
            in_specs=[
                pl.BlockSpec((1, block_q, D), lambda b, qi, ki: (b, qi, 0)),
                pl.BlockSpec((1, block_k, D), lambda b, qi, ki: (b, ki, 0)),
                pl.BlockSpec((D, D), lambda b, qi, ki: (0, 0)),
                pl.BlockSpec((1, D), lambda b, qi, ki: (0, 0)),
                pl.BlockSpec((D, 2 * D), lambda b, qi, ki: (0, 0)),
                pl.BlockSpec((1, 2 * D), lambda b, qi, ki: (0, 0)),
                pl.BlockSpec((n_heads, d_head, D), lambda b, qi, ki: (0, 0, 0)),
                pl.BlockSpec((1, D), lambda b, qi, ki: (0, 0)),
            ],
            out_specs=pl.BlockSpec((1, block_q, D), lambda b, qi, ki: (b, qi, 0)),
            scratch_shapes=[
                pltpu.VMEM((n_heads, block_q, d_head), jnp.float32),  # cached Q
                pltpu.VMEM((n_heads, block_q, d_head), jnp.float32),  # accumulator
                pltpu.VMEM((n_heads, block_q, 1), jnp.float32),       # running max
                pltpu.VMEM((n_heads, block_q, 1), jnp.float32),       # running denom
            ],
        ),
        compiler_params=pltpu.CompilerParams(
            dimension_semantics=("parallel", "parallel", "arbitrary"),
            vmem_limit_bytes=48 * 1024 * 1024,
        ),
    )(x, x, w_q_t, b_q_r, w_kv_t, b_kv_r, w_out_t, b_out_r)


def self_attention_ref(x, w_in, b_in, w_out, b_out, n_heads, causal_mask=False):
    """Pure-JAX reference mirroring the PyTorch forward."""
    B, S, D = x.shape
    d_head = D // n_heads
    qkv = x @ w_in.T + b_in
    q, k, v = jnp.split(qkv, 3, axis=-1)

    def to_heads(t):
        return t.reshape(B, S, n_heads, d_head).transpose(0, 2, 1, 3)

    q, k, v = to_heads(q), to_heads(k), to_heads(v)
    scores = q @ jnp.swapaxes(k, -1, -2)
    if causal_mask:
        mask = jnp.triu(jnp.ones((S, S), dtype=bool), 1)
        scores = jnp.where(mask, -jnp.inf, scores)
    scores = scores / math.sqrt(d_head)
    w = jax.nn.softmax(scores, axis=-1)
    out = (w @ v).transpose(0, 2, 1, 3).reshape(B, S, D)
    return out @ w_out.T + b_out


if __name__ == "__main__":
    # Small shapes implied by the module: batch=2, seq=8, d_embed=32, heads=4.
    B, D, H = 2, 32, 4

    key = jax.random.PRNGKey(0)
    kx, kwi, kbi, kwo, kbo = jax.random.split(key, 5)

    # PyTorch nn.Linear stores W as [out, in].
    w_in = jax.random.normal(kwi, (3 * D, D), dtype=jnp.float32) * 0.08
    b_in = jax.random.normal(kbi, (3 * D,), dtype=jnp.float32) * 0.02
    w_out = jax.random.normal(kwo, (D, D), dtype=jnp.float32) * 0.08
    b_out = jax.random.normal(kbo, (D,), dtype=jnp.float32) * 0.02

    ok = True
    # Config 1: the module's small shape (single tile).  Config 2 exercises the
    # multi-tile flash path (several kv tiles, causal mask + block skipping
    # across tiles).
    configs = [
        dict(S=8, block_q=None, block_k=None),
        dict(S=32, block_q=16, block_k=8),
    ]
    for cfg in configs:
        S = cfg["S"]
        x = jax.random.normal(kx, (B, S, D), dtype=jnp.float32)
        for causal in (False, True):
            out = self_attention_pallas(x, w_in, b_in, w_out, b_out, H,
                                        causal_mask=causal,
                                        block_q=cfg["block_q"],
                                        block_k=cfg["block_k"])
            out = jax.block_until_ready(out)
            ref = self_attention_ref(x, w_in, b_in, w_out, b_out, H,
                                     causal_mask=causal)
            if not jnp.allclose(out, ref, atol=2e-4, rtol=2e-4):
                ok = False

    if ok:
        print("KERNEL_OK")
    else:
        print("KERNEL_MISMATCH")
</pallas_src>

<mosaic_0001>
module attributes {stable_mosaic.version = 11 : i64} {
  func.func @_self_attention_kernel(%arg0: i32, %arg1: i32, %arg2: i32, %arg3: memref<1x8x32xf32, #tpu.memory_space<vmem>>, %arg4: memref<1x8x32xf32, #tpu.memory_space<vmem>>, %arg5: memref<32x32xf32, #tpu.memory_space<vmem>>, %arg6: memref<1x32xf32, #tpu.memory_space<vmem>>, %arg7: memref<32x64xf32, #tpu.memory_space<vmem>>, %arg8: memref<1x64xf32, #tpu.memory_space<vmem>>, %arg9: memref<4x8x32xf32, #tpu.memory_space<vmem>>, %arg10: memref<1x32xf32, #tpu.memory_space<vmem>>, %arg11: memref<1x8x32xf32, #tpu.memory_space<vmem>>, %arg12: memref<4x8x8xf32, #tpu.memory_space<vmem>>, %arg13: memref<4x8x8xf32, #tpu.memory_space<vmem>>, %arg14: memref<4x8x1xf32, #tpu.memory_space<vmem>>, %arg15: memref<4x8x1xf32, #tpu.memory_space<vmem>>) attributes {dimension_semantics = [#tpu.dimension_semantics<parallel>, #tpu.dimension_semantics<parallel>, #tpu.dimension_semantics<arbitrary>], iteration_bounds = array<i64: 2, 1, 1>, scalar_prefetch = 0 : i64, scratch_operands = 4 : i64, tpu.core_type = #tpu.core_type<tc>, window_params = [{transform_indices = @transform_0, window_bounds = array<i64: 1, 8, 32>}, {transform_indices = @transform_1, window_bounds = array<i64: 1, 8, 32>}, {pipeline_mode = #tpu.pipeline_mode<synchronous>, transform_indices = @transform_2, window_bounds = array<i64: 32, 32>}, {pipeline_mode = #tpu.pipeline_mode<synchronous>, transform_indices = @transform_3, window_bounds = array<i64: 1, 32>}, {pipeline_mode = #tpu.pipeline_mode<synchronous>, transform_indices = @transform_4, window_bounds = array<i64: 32, 64>}, {pipeline_mode = #tpu.pipeline_mode<synchronous>, transform_indices = @transform_5, window_bounds = array<i64: 1, 64>}, {pipeline_mode = #tpu.pipeline_mode<synchronous>, transform_indices = @transform_6, window_bounds = array<i64: 4, 8, 32>}, {pipeline_mode = #tpu.pipeline_mode<synchronous>, transform_indices = @transform_7, window_bounds = array<i64: 1, 32>}, {transform_indices = @transform_8, window_bounds = array<i64: 1, 8, 32>}]} {
    %c0_i32 = arith.constant 0 : i32
    %0 = arith.cmpi eq, %arg2, %c0_i32 : i32
    %1 = arith.extui %0 : i1 to i32
    %c0_i32_0 = arith.constant 0 : i32
    %2 = arith.cmpi ne, %1, %c0_i32_0 : i32
    scf.if %2 {
      %cst_106 = arith.constant -1.000000e+30 : f32
      %157 = vector.broadcast %cst_106 : f32 to vector<4x8x1xf32>
      %c0_107 = arith.constant 0 : index
      %c0_108 = arith.constant 0 : index
      %c0_109 = arith.constant 0 : index
      %158 = vector.load %arg14[%c0_107, %c0_108, %c0_109] : memref<4x8x1xf32, #tpu.memory_space<vmem>>, vector<4x8x1xf32>
      tpu.vector_store %arg14[%c0_107, %c0_108, %c0_109], %157 {strides = array<i32>} : memref<4x8x1xf32, #tpu.memory_space<vmem>>, vector<4x8x1xf32>,
      %cst_110 = arith.constant 0.000000e+00 : f32
      %159 = vector.broadcast %cst_110 : f32 to vector<4x8x1xf32>
      %c0_111 = arith.constant 0 : index
      %c0_112 = arith.constant 0 : index
      %c0_113 = arith.constant 0 : index
      %160 = vector.load %arg15[%c0_111, %c0_112, %c0_113] : memref<4x8x1xf32, #tpu.memory_space<vmem>>, vector<4x8x1xf32>
      tpu.vector_store %arg15[%c0_111, %c0_112, %c0_113], %159 {strides = array<i32>} : memref<4x8x1xf32, #tpu.memory_space<vmem>>, vector<4x8x1xf32>,
      %cst_114 = arith.constant 0.000000e+00 : f32
      %161 = vector.broadcast %cst_114 : f32 to vector<4x8x8xf32>
      %c0_115 = arith.constant 0 : index
      %c0_116 = arith.constant 0 : index
      %c0_117 = arith.constant 0 : index
      %162 = vector.load %arg13[%c0_115, %c0_116, %c0_117] : memref<4x8x8xf32, #tpu.memory_space<vmem>>, vector<4x8x8xf32>
      tpu.vector_store %arg13[%c0_115, %c0_116, %c0_117], %161 {strides = array<i32>} : memref<4x8x8xf32, #tpu.memory_space<vmem>>, vector<4x8x8xf32>,
      %c0_118 = arith.constant 0 : index
      %c0_119 = arith.constant 0 : index
      %c0_120 = arith.constant 0 : index
      %163 = vector.load %arg3[%c0_118, %c0_119, %c0_120] : memref<1x8x32xf32, #tpu.memory_space<vmem>>, vector<1x8x32xf32>
      %164 = vector.shape_cast %163 : vector<1x8x32xf32> to vector<8x32xf32>
      %c0_121 = arith.constant 0 : index
      %c0_122 = arith.constant 0 : index
      %165 = vector.load %arg5[%c0_121, %c0_122] : memref<32x32xf32, #tpu.memory_space<vmem>>, vector<32x32xf32>
      %cst_123 = arith.constant dense<0.000000e+00> : vector<8x32xf32>
      %166 = tpu.matmul %164, %165, %cst_123 {dimension_numbers = #tpu.dot_dimension_numbers<[1], [0], [0], [1], [0, 0, 1, 1], [], []>} : vector<8x32xf32>, vector<32x32xf32>, vector<8x32xf32> -> vector<8x32xf32>
      %c0_124 = arith.constant 0 : index
      %c0_125 = arith.constant 0 : index
      %167 = vector.load %arg6[%c0_124, %c0_125] : memref<1x32xf32, #tpu.memory_space<vmem>>, vector<1x32xf32>
      %168 = vector.broadcast %167 : vector<1x32xf32> to vector<8x32xf32>
      %169 = arith.addf %166, %168 : vector<8x32xf32>
      %cst_126 = arith.constant 0.353553385 : f32
      %170 = vector.broadcast %cst_126 : f32 to vector<8x32xf32>
      %171 = arith.mulf %169, %170 : vector<8x32xf32>
      %172 = vector.extract_strided_slice %171 {offsets = [0, 0], sizes = [8, 8], strides = [1, 1]} : vector<8x32xf32> to vector<8x8xf32>
      %c0_127 = arith.constant 0 : index
      %c0_128 = arith.constant 0 : index
      %c0_129 = arith.constant 0 : index
      %173 = vector.load %arg12[%c0_127, %c0_128, %c0_129] : memref<4x8x8xf32, #tpu.memory_space<vmem>>, vector<1x8x8xf32>
      %174 = vector.shape_cast %173 : vector<1x8x8xf32> to vector<8x8xf32>
      %175 = vector.shape_cast %172 : vector<8x8xf32> to vector<1x8x8xf32>
      tpu.vector_store %arg12[%c0_127, %c0_128, %c0_129], %175 {strides = array<i32>} : memref<4x8x8xf32, #tpu.memory_space<vmem>>, vector<1x8x8xf32>,
      %176 = vector.extract_strided_slice %171 {offsets = [0, 8], sizes = [8, 8], strides = [1, 1]} : vector<8x32xf32> to vector<8x8xf32>
      %c1_130 = arith.constant 1 : index
      %c0_131 = arith.constant 0 : index
      %c0_132 = arith.constant 0 : index
      %177 = vector.load %arg12[%c1_130, %c0_131, %c0_132] : memref<4x8x8xf32, #tpu.memory_space<vmem>>, vector<1x8x8xf32>
      %178 = vector.shape_cast %177 : vector<1x8x8xf32> to vector<8x8xf32>
      %179 = vector.shape_cast %176 : vector<8x8xf32> to vector<1x8x8xf32>
      tpu.vector_store %arg12[%c1_130, %c0_131, %c0_132], %179 {strides = array<i32>} : memref<4x8x8xf32, #tpu.memory_space<vmem>>, vector<1x8x8xf32>,
      %180 = vector.extract_strided_slice %171 {offsets = [0, 16], sizes = [8, 8], strides = [1, 1]} : vector<8x32xf32> to vector<8x8xf32>
      %c2_133 = arith.constant 2 : index
      %c0_134 = arith.constant 0 : index
      %c0_135 = arith.constant 0 : index
      %181 = vector.load %arg12[%c2_133, %c0_134, %c0_135] : memref<4x8x8xf32, #tpu.memory_space<vmem>>, vector<1x8x8xf32>
      %182 = vector.shape_cast %181 : vector<1x8x8xf32> to vector<8x8xf32>
      %183 = vector.shape_cast %180 : vector<8x8xf32> to vector<1x8x8xf32>
      tpu.vector_store %arg12[%c2_133, %c0_134, %c0_135], %183 {strides = array<i32>} : memref<4x8x8xf32, #tpu.memory_space<vmem>>, vector<1x8x8xf32>,
      %184 = vector.extract_strided_slice %171 {offsets = [0, 24], sizes = [8, 8], strides = [1, 1]} : vector<8x32xf32> to vector<8x8xf32>
      %c3_136 = arith.constant 3 : index
      %c0_137 = arith.constant 0 : index
      %c0_138 = arith.constant 0 : index
      %185 = vector.load %arg12[%c3_136, %c0_137, %c0_138] : memref<4x8x8xf32, #tpu.memory_space<vmem>>, vector<1x8x8xf32>
      %186 = vector.shape_cast %185 : vector<1x8x8xf32> to vector<8x8xf32>
      %187 = vector.shape_cast %184 : vector<8x8xf32> to vector<1x8x8xf32>
      tpu.vector_store %arg12[%c3_136, %c0_137, %c0_138], %187 {strides = array<i32>} : memref<4x8x8xf32, #tpu.memory_space<vmem>>, vector<1x8x8xf32>,
    } else {
    }
    %c0 = arith.constant 0 : index
    %c0_1 = arith.constant 0 : index
    %c0_2 = arith.constant 0 : index
    %3 = vector.load %arg4[%c0, %c0_1, %c0_2] : memref<1x8x32xf32, #tpu.memory_space<vmem>>, vector<1x8x32xf32>
    %4 = vector.shape_cast %3 : vector<1x8x32xf32> to vector<8x32xf32>
    %c0_3 = arith.constant 0 : index
    %c0_4 = arith.constant 0 : index
    %5 = vector.load %arg7[%c0_3, %c0_4] : memref<32x64xf32, #tpu.memory_space<vmem>>, vector<32x64xf32>
    %cst = arith.constant dense<0.000000e+00> : vector<8x64xf32>
    %6 = tpu.matmul %4, %5, %cst {dimension_numbers = #tpu.dot_dimension_numbers<[1], [0], [0], [1], [0, 0, 1, 1], [], []>} : vector<8x32xf32>, vector<32x64xf32>, vector<8x64xf32> -> vector<8x64xf32>
    %c0_5 = arith.constant 0 : index
    %c0_6 = arith.constant 0 : index
    %7 = vector.load %arg8[%c0_5, %c0_6] : memref<1x64xf32, #tpu.memory_space<vmem>>, vector<1x64xf32>
    %8 = vector.broadcast %7 : vector<1x64xf32> to vector<8x64xf32>
    %9 = arith.addf %6, %8 : vector<8x64xf32>
    %10 = vector.extract_strided_slice %9 {offsets = [0, 0], sizes = [8, 8], strides = [1, 1]} : vector<8x64xf32> to vector<8x8xf32>
    %11 = vector.extract_strided_slice %9 {offsets = [0, 32], sizes = [8, 8], strides = [1, 1]} : vector<8x64xf32> to vector<8x8xf32>
    %c0_7 = arith.constant 0 : index
    %c0_8 = arith.constant 0 : index
    %c0_9 = arith.constant 0 : index
    %12 = vector.load %arg12[%c0_7, %c0_8, %c0_9] : memref<4x8x8xf32, #tpu.memory_space<vmem>>, vector<1x8x8xf32>
    %13 = vector.shape_cast %12 : vector<1x8x8xf32> to vector<8x8xf32>
    %cst_10 = arith.constant dense<0.000000e+00> : vector<8x8xf32>
    %14 = tpu.matmul %13, %10, %cst_10 {dimension_numbers = #tpu.dot_dimension_numbers<[1], [1], [0], [0], [0, 0, 1, 0], [], []>} : vector<8x8xf32>, vector<8x8xf32>, vector<8x8xf32> -> vector<8x8xf32>
    %c0_11 = arith.constant 0 : index
    %c0_12 = arith.constant 0 : index
    %c0_13 = arith.constant 0 : index
    %15 = vector.load %arg14[%c0_11, %c0_12, %c0_13] : memref<4x8x1xf32, #tpu.memory_space<vmem>>, vector<1x8x1xf32>
    %16 = vector.shape_cast %15 : vector<1x8x1xf32> to vector<8x1xf32>
    %c0_14 = arith.constant 0 : index
    %c0_15 = arith.constant 0 : index
    %c0_16 = arith.constant 0 : index
    %17 = vector.load %arg15[%c0_14, %c0_15, %c0_16] : memref<4x8x1xf32, #tpu.memory_space<vmem>>, vector<1x8x1xf32>
    %18 = vector.shape_cast %17 : vector<1x8x1xf32> to vector<8x1xf32>
    %cst_17 = arith.constant dense<0xFF800000> : vector<8xf32>
    %19 = vector.multi_reduction <maximumf>, %14, %cst_17 [1] : vector<8x8xf32> to vector<8xf32>
    %20 = vector.shape_cast %19 : vector<8xf32> to vector<8x1xf32>
    %21 = arith.maximumf %16, %20 : vector<8x1xf32>
    %22 = arith.subf %16, %21 : vector<8x1xf32>
    %23 = math.exp %22 : vector<8x1xf32>
    %24 = vector.broadcast %21 : vector<8x1xf32> to vector<8x8xf32>
    %25 = arith.subf %14, %24 : vector<8x8xf32>
    %26 = math.exp %25 : vector<8x8xf32>
    %27 = arith.mulf %23, %18 : vector<8x1xf32>
    %cst_18 = arith.constant dense<0.000000e+00> : vector<8xf32>
    %28 = vector.multi_reduction <add>, %26, %cst_18 [1] : vector<8x8xf32> to vector<8xf32>
    %29 = vector.shape_cast %28 : vector<8xf32> to vector<8x1xf32>
    %30 = arith.addf %27, %29 : vector<8x1xf32>
    %c0_19 = arith.constant 0 : index
    %c0_20 = arith.constant 0 : index
    %c0_21 = arith.constant 0 : index
    %31 = vector.load %arg15[%c0_19, %c0_20, %c0_21] : memref<4x8x1xf32, #tpu.memory_space<vmem>>, vector<1x8x1xf32>
    %32 = vector.shape_cast %31 : vector<1x8x1xf32> to vector<8x1xf32>
    %33 = vector.shape_cast %30 : vector<8x1xf32> to vector<1x8x1xf32>
    tpu.vector_store %arg15[%c0_19, %c0_20, %c0_21], %33 {strides = array<i32>} : memref<4x8x1xf32, #tpu.memory_space<vmem>>, vector<1x8x1xf32>,
    %c0_22 = arith.constant 0 : index
    %c0_23 = arith.constant 0 : index
    %c0_24 = arith.constant 0 : index
    %34 = vector.load %arg14[%c0_22, %c0_23, %c0_24] : memref<4x8x1xf32, #tpu.memory_space<vmem>>, vector<1x8x1xf32>
    %35 = vector.shape_cast %34 : vector<1x8x1xf32> to vector<8x1xf32>
    %36 = vector.shape_cast %21 : vector<8x1xf32> to vector<1x8x1xf32>
    tpu.vector_store %arg14[%c0_22, %c0_23, %c0_24], %36 {strides = array<i32>} : memref<4x8x1xf32, #tpu.memory_space<vmem>>, vector<1x8x1xf32>,
    %c0_25 = arith.constant 0 : index
    %c0_26 = arith.constant 0 : index
    %c0_27 = arith.constant 0 : index
    %37 = vector.load %arg13[%c0_25, %c0_26, %c0_27] : memref<4x8x8xf32, #tpu.memory_space<vmem>>, vector<1x8x8xf32>
    %38 = vector.shape_cast %37 : vector<1x8x8xf32> to vector<8x8xf32>
    %39 = vector.broadcast %23 : vector<8x1xf32> to vector<8x8xf32>
    %40 = arith.mulf %39, %38 : vector<8x8xf32>
    %cst_28 = arith.constant dense<0.000000e+00> : vector<8x8xf32>
    %41 = tpu.matmul %26, %11, %cst_28 {dimension_numbers = #tpu.dot_dimension_numbers<[1], [0], [0], [1], [0, 0, 1, 1], [], []>} : vector<8x8xf32>, vector<8x8xf32>, vector<8x8xf32> -> vector<8x8xf32>
    %42 = arith.addf %40, %41 : vector<8x8xf32>
    %c0_29 = arith.constant 0 : index
    %c0_30 = arith.constant 0 : index
    %c0_31 = arith.constant 0 : index
    %43 = vector.load %arg13[%c0_29, %c0_30, %c0_31] : memref<4x8x8xf32, #tpu.memory_space<vmem>>, vector<1x8x8xf32>
    %44 = vector.shape_cast %43 : vector<1x8x8xf32> to vector<8x8xf32>
    %45 = vector.shape_cast %42 : vector<8x8xf32> to vector<1x8x8xf32>
    tpu.vector_store %arg13[%c0_29, %c0_30, %c0_31], %45 {strides = array<i32>} : memref<4x8x8xf32, #tpu.memory_space<vmem>>, vector<1x8x8xf32>,
    %46 = vector.extract_strided_slice %9 {offsets = [0, 8], sizes = [8, 8], strides = [1, 1]} : vector<8x64xf32> to vector<8x8xf32>
    %47 = vector.extract_strided_slice %9 {offsets = [0, 40], sizes = [8, 8], strides = [1, 1]} : vector<8x64xf32> to vector<8x8xf32>
    %c1 = arith.constant 1 : index
    %c0_32 = arith.constant 0 : index
    %c0_33 = arith.constant 0 : index
    %48 = vector.load %arg12[%c1, %c0_32, %c0_33] : memref<4x8x8xf32, #tpu.memory_space<vmem>>, vector<1x8x8xf32>
    %49 = vector.shape_cast %48 : vector<1x8x8xf32> to vector<8x8xf32>
    %cst_34 = arith.constant dense<0.000000e+00> : vector<8x8xf32>
    %50 = tpu.matmul %49, %46, %cst_34 {dimension_numbers = #tpu.dot_dimension_numbers<[1], [1], [0], [0], [0, 0, 1, 0], [], []>} : vector<8x8xf32>, vector<8x8xf32>, vector<8x8xf32> -> vector<8x8xf32>
    %c1_35 = arith.constant 1 : index
    %c0_36 = arith.constant 0 : index
    %c0_37 = arith.constant 0 : index
    %51 = vector.load %arg14[%c1_35, %c0_36, %c0_37] : memref<4x8x1xf32, #tpu.memory_space<vmem>>, vector<1x8x1xf32>
    %52 = vector.shape_cast %51 : vector<1x8x1xf32> to vector<8x1xf32>
    %c1_38 = arith.constant 1 : index
    %c0_39 = arith.constant 0 : index
    %c0_40 = arith.constant 0 : index
    %53 = vector.load %arg15[%c1_38, %c0_39, %c0_40] : memref<4x8x1xf32, #tpu.memory_space<vmem>>, vector<1x8x1xf32>
    %54 = vector.shape_cast %53 : vector<1x8x1xf32> to vector<8x1xf32>
    %cst_41 = arith.constant dense<0xFF800000> : vector<8xf32>
    %55 = vector.multi_reduction <maximumf>, %50, %cst_41 [1] : vector<8x8xf32> to vector<8xf32>
    %56 = vector.shape_cast %55 : vector<8xf32> to vector<8x1xf32>
    %57 = arith.maximumf %52, %56 : vector<8x1xf32>
    %58 = arith.subf %52, %57 : vector<8x1xf32>
    %59 = math.exp %58 : vector<8x1xf32>
    %60 = vector.broadcast %57 : vector<8x1xf32> to vector<8x8xf32>
    %61 = arith.subf %50, %60 : vector<8x8xf32>
    %62 = math.exp %61 : vector<8x8xf32>
    %63 = arith.mulf %59, %54 : vector<8x1xf32>
    %cst_42 = arith.constant dense<0.000000e+00> : vector<8xf32>
    %64 = vector.multi_reduction <add>, %62, %cst_42 [1] : vector<8x8xf32> to vector<8xf32>
    %65 = vector.shape_cast %64 : vector<8xf32> to vector<8x1xf32>
    %66 = arith.addf %63, %65 : vector<8x1xf32>
    %c1_43 = arith.constant 1 : index
    %c0_44 = arith.constant 0 : index
    %c0_45 = arith.constant 0 : index
    %67 = vector.load %arg15[%c1_43, %c0_44, %c0_45] : memref<4x8x1xf32, #tpu.memory_space<vmem>>, vector<1x8x1xf32>
    %68 = vector.shape_cast %67 : vector<1x8x1xf32> to vector<8x1xf32>
    %69 = vector.shape_cast %66 : vector<8x1xf32> to vector<1x8x1xf32>
    tpu.vector_store %arg15[%c1_43, %c0_44, %c0_45], %69 {strides = array<i32>} : memref<4x8x1xf32, #tpu.memory_space<vmem>>, vector<1x8x1xf32>,
    %c1_46 = arith.constant 1 : index
    %c0_47 = arith.constant 0 : index
    %c0_48 = arith.constant 0 : index
    %70 = vector.load %arg14[%c1_46, %c0_47, %c0_48] : memref<4x8x1xf32, #tpu.memory_space<vmem>>, vector<1x8x1xf32>
    %71 = vector.shape_cast %70 : vector<1x8x1xf32> to vector<8x1xf32>
    %72 = vector.shape_cast %57 : vector<8x1xf32> to vector<1x8x1xf32>
    tpu.vector_store %arg14[%c1_46, %c0_47, %c0_48], %72 {strides = array<i32>} : memref<4x8x1xf32, #tpu.memory_space<vmem>>, vector<1x8x1xf32>,
    %c1_49 = arith.constant 1 : index
    %c0_50 = arith.constant 0 : index
    %c0_51 = arith.constant 0 : index
    %73 = vector.load %arg13[%c1_49, %c0_50, %c0_51] : memref<4x8x8xf32, #tpu.memory_space<vmem>>, vector<1x8x8xf32>
    %74 = vector.shape_cast %73 : vector<1x8x8xf32> to vector<8x8xf32>
    %75 = vector.broadcast %59 : vector<8x1xf32> to vector<8x8xf32>
    %76 = arith.mulf %75, %74 : vector<8x8xf32>
    %cst_52 = arith.constant dense<0.000000e+00> : vector<8x8xf32>
    %77 = tpu.matmul %62, %47, %cst_52 {dimension_numbers = #tpu.dot_dimension_numbers<[1], [0], [0], [1], [0, 0, 1, 1], [], []>} : vector<8x8xf32>, vector<8x8xf32>, vector<8x8xf32> -> vector<8x8xf32>
    %78 = arith.addf %76, %77 : vector<8x8xf32>
    %c1_53 = arith.constant 1 : index
    %c0_54 = arith.constant 0 : index
    %c0_55 = arith.constant 0 : index
    %79 = vector.load %arg13[%c1_53, %c0_54, %c0_55] : memref<4x8x8xf32, #tpu.memory_space<vmem>>, vector<1x8x8xf32>
    %80 = vector.shape_cast %79 : vector<1x8x8xf32> to vector<8x8xf32>
    %81 = vector.shape_cast %78 : vector<8x8xf32> to vector<1x8x8xf32>
    tpu.vector_store %arg13[%c1_53, %c0_54, %c0_55], %81 {strides = array<i32>} : memref<4x8x8xf32, #tpu.memory_space<vmem>>, vector<1x8x8xf32>,
    %82 = vector.extract_strided_slice %9 {offsets = [0, 16], sizes = [8, 8], strides = [1, 1]} : vector<8x64xf32> to vector<8x8xf32>
    %83 = vector.extract_strided_slice %9 {offsets = [0, 48], sizes = [8, 8], strides = [1, 1]} : vector<8x64xf32> to vector<8x8xf32>
    %c2 = arith.constant 2 : index
    %c0_56 = arith.constant 0 : index
    %c0_57 = arith.constant 0 : index
    %84 = vector.load %arg12[%c2, %c0_56, %c0_57] : memref<4x8x8xf32, #tpu.memory_space<vmem>>, vector<1x8x8xf32>
    %85 = vector.shape_cast %84 : vector<1x8x8xf32> to vector<8x8xf32>
    %cst_58 = arith.constant dense<0.000000e+00> : vector<8x8xf32>
    %86 = tpu.matmul %85, %82, %cst_58 {dimension_numbers = #tpu.dot_dimension_numbers<[1], [1], [0], [0], [0, 0, 1, 0], [], []>} : vector<8x8xf32>, vector<8x8xf32>, vector<8x8xf32> -> vector<8x8xf32>
    %c2_59 = arith.constant 2 : index
    %c0_60 = arith.constant 0 : index
    %c0_61 = arith.constant 0 : index
    %87 = vector.load %arg14[%c2_59, %c0_60, %c0_61] : memref<4x8x1xf32, #tpu.memory_space<vmem>>, vector<1x8x1xf32>
    %88 = vector.shape_cast %87 : vector<1x8x1xf32> to vector<8x1xf32>
    %c2_62 = arith.constant 2 : index
    %c0_63 = arith.constant 0 : index
    %c0_64 = arith.constant 0 : index
    %89 = vector.load %arg15[%c2_62, %c0_63, %c0_64] : memref<4x8x1xf32, #tpu.memory_space<vmem>>, vector<1x8x1xf32>
    %90 = vector.shape_cast %89 : vector<1x8x1xf32> to vector<8x1xf32>
    %cst_65 = arith.constant dense<0xFF800000> : vector<8xf32>
    %91 = vector.multi_reduction <maximumf>, %86, %cst_65 [1] : vector<8x8xf32> to vector<8xf32>
    %92 = vector.shape_cast %91 : vector<8xf32> to vector<8x1xf32>
    %93 = arith.maximumf %88, %92 : vector<8x1xf32>
    %94 = arith.subf %88, %93 : vector<8x1xf32>
    %95 = math.exp %94 : vector<8x1xf32>
    %96 = vector.broadcast %93 : vector<8x1xf32> to vector<8x8xf32>
    %97 = arith.subf %86, %96 : vector<8x8xf32>
    %98 = math.exp %97 : vector<8x8xf32>
    %99 = arith.mulf %95, %90 : vector<8x1xf32>
    %cst_66 = arith.constant dense<0.000000e+00> : vector<8xf32>
    %100 = vector.multi_reduction <add>, %98, %cst_66 [1] : vector<8x8xf32> to vector<8xf32>
    %101 = vector.shape_cast %100 : vector<8xf32> to vector<8x1xf32>
    %102 = arith.addf %99, %101 : vector<8x1xf32>
    %c2_67 = arith.constant 2 : index
    %c0_68 = arith.constant 0 : index
    %c0_69 = arith.constant 0 : index
    %103 = vector.load %arg15[%c2_67, %c0_68, %c0_69] : memref<4x8x1xf32, #tpu.memory_space<vmem>>, vector<1x8x1xf32>
    %104 = vector.shape_cast %103 : vector<1x8x1xf32> to vector<8x1xf32>
    %105 = vector.shape_cast %102 : vector<8x1xf32> to vector<1x8x1xf32>
    tpu.vector_store %arg15[%c2_67, %c0_68, %c0_69], %105 {strides = array<i32>} : memref<4x8x1xf32, #tpu.memory_space<vmem>>, vector<1x8x1xf32>,
    %c2_70 = arith.constant 2 : index
    %c0_71 = arith.constant 0 : index
    %c0_72 = arith.constant 0 : index
    %106 = vector.load %arg14[%c2_70, %c0_71, %c0_72] : memref<4x8x1xf32, #tpu.memory_space<vmem>>, vector<1x8x1xf32>
    %107 = vector.shape_cast %106 : vector<1x8x1xf32> to vector<8x1xf32>
    %108 = vector.shape_cast %93 : vector<8x1xf32> to vector<1x8x1xf32>
    tpu.vector_store %arg14[%c2_70, %c0_71, %c0_72], %108 {strides = array<i32>} : memref<4x8x1xf32, #tpu.memory_space<vmem>>, vector<1x8x1xf32>,
    %c2_73 = arith.constant 2 : index
    %c0_74 = arith.constant 0 : index
    %c0_75 = arith.constant 0 : index
    %109 = vector.load %arg13[%c2_73, %c0_74, %c0_75] : memref<4x8x8xf32, #tpu.memory_space<vmem>>, vector<1x8x8xf32>
    %110 = vector.shape_cast %109 : vector<1x8x8xf32> to vector<8x8xf32>
    %111 = vector.broadcast %95 : vector<8x1xf32> to vector<8x8xf32>
    %112 = arith.mulf %111, %110 : vector<8x8xf32>
    %cst_76 = arith.constant dense<0.000000e+00> : vector<8x8xf32>
    %113 = tpu.matmul %98, %83, %cst_76 {dimension_numbers = #tpu.dot_dimension_numbers<[1], [0], [0], [1], [0, 0, 1, 1], [], []>} : vector<8x8xf32>, vector<8x8xf32>, vector<8x8xf32> -> vector<8x8xf32>
    %114 = arith.addf %112, %113 : vector<8x8xf32>
    %c2_77 = arith.constant 2 : index
    %c0_78 = arith.constant 0 : index
    %c0_79 = arith.constant 0 : index
    %115 = vector.load %arg13[%c2_77, %c0_78, %c0_79] : memref<4x8x8xf32, #tpu.memory_space<vmem>>, vector<1x8x8xf32>
    %116 = vector.shape_cast %115 : vector<1x8x8xf32> to vector<8x8xf32>
    %117 = vector.shape_cast %114 : vector<8x8xf32> to vector<1x8x8xf32>
    tpu.vector_store %arg13[%c2_77, %c0_78, %c0_79], %117 {strides = array<i32>} : memref<4x8x8xf32, #tpu.memory_space<vmem>>, vector<1x8x8xf32>,
    %118 = vector.extract_strided_slice %9 {offsets = [0, 24], sizes = [8, 8], strides = [1, 1]} : vector<8x64xf32> to vector<8x8xf32>
    %119 = vector.extract_strided_slice %9 {offsets = [0, 56], sizes = [8, 8], strides = [1, 1]} : vector<8x64xf32> to vector<8x8xf32>
    %c3 = arith.constant 3 : index
    %c0_80 = arith.constant 0 : index
    %c0_81 = arith.constant 0 : index
    %120 = vector.load %arg12[%c3, %c0_80, %c0_81] : memref<4x8x8xf32, #tpu.memory_space<vmem>>, vector<1x8x8xf32>
    %121 = vector.shape_cast %120 : vector<1x8x8xf32> to vector<8x8xf32>
    %cst_82 = arith.constant dense<0.000000e+00> : vector<8x8xf32>
    %122 = tpu.matmul %121, %118, %cst_82 {dimension_numbers = #tpu.dot_dimension_numbers<[1], [1], [0], [0], [0, 0, 1, 0], [], []>} : vector<8x8xf32>, vector<8x8xf32>, vector<8x8xf32> -> vector<8x8xf32>
    %c3_83 = arith.constant 3 : index
    %c0_84 = arith.constant 0 : index
    %c0_85 = arith.constant 0 : index
    %123 = vector.load %arg14[%c3_83, %c0_84, %c0_85] : memref<4x8x1xf32, #tpu.memory_space<vmem>>, vector<1x8x1xf32>
    %124 = vector.shape_cast %123 : vector<1x8x1xf32> to vector<8x1xf32>
    %c3_86 = arith.constant 3 : index
    %c0_87 = arith.constant 0 : index
    %c0_88 = arith.constant 0 : index
    %125 = vector.load %arg15[%c3_86, %c0_87, %c0_88] : memref<4x8x1xf32, #tpu.memory_space<vmem>>, vector<1x8x1xf32>
    %126 = vector.shape_cast %125 : vector<1x8x1xf32> to vector<8x1xf32>
    %cst_89 = arith.constant dense<0xFF800000> : vector<8xf32>
    %127 = vector.multi_reduction <maximumf>, %122, %cst_89 [1] : vector<8x8xf32> to vector<8xf32>
    %128 = vector.shape_cast %127 : vector<8xf32> to vector<8x1xf32>
    %129 = arith.maximumf %124, %128 : vector<8x1xf32>
    %130 = arith.subf %124, %129 : vector<8x1xf32>
    %131 = math.exp %130 : vector<8x1xf32>
    %132 = vector.broadcast %129 : vector<8x1xf32> to vector<8x8xf32>
    %133 = arith.subf %122, %132 : vector<8x8xf32>
    %134 = math.exp %133 : vector<8x8xf32>
    %135 = arith.mulf %131, %126 : vector<8x1xf32>
    %cst_90 = arith.constant dense<0.000000e+00> : vector<8xf32>
    %136 = vector.multi_reduction <add>, %134, %cst_90 [1] : vector<8x8xf32> to vector<8xf32>
    %137 = vector.shape_cast %136 : vector<8xf32> to vector<8x1xf32>
    %138 = arith.addf %135, %137 : vector<8x1xf32>
    %c3_91 = arith.constant 3 : index
    %c0_92 = arith.constant 0 : index
    %c0_93 = arith.constant 0 : index
    %139 = vector.load %arg15[%c3_91, %c0_92, %c0_93] : memref<4x8x1xf32, #tpu.memory_space<vmem>>, vector<1x8x1xf32>
    %140 = vector.shape_cast %139 : vector<1x8x1xf32> to vector<8x1xf32>
    %141 = vector.shape_cast %138 : vector<8x1xf32> to vector<1x8x1xf32>
    tpu.vector_store %arg15[%c3_91, %c0_92, %c0_93], %141 {strides = array<i32>} : memref<4x8x1xf32, #tpu.memory_space<vmem>>, vector<1x8x1xf32>,
    %c3_94 = arith.constant 3 : index
    %c0_95 = arith.constant 0 : index
    %c0_96 = arith.constant 0 : index
    %142 = vector.load %arg14[%c3_94, %c0_95, %c0_96] : memref<4x8x1xf32, #tpu.memory_space<vmem>>, vector<1x8x1xf32>
    %143 = vector.shape_cast %142 : vector<1x8x1xf32> to vector<8x1xf32>
    %144 = vector.shape_cast %129 : vector<8x1xf32> to vector<1x8x1xf32>
    tpu.vector_store %arg14[%c3_94, %c0_95, %c0_96], %144 {strides = array<i32>} : memref<4x8x1xf32, #tpu.memory_space<vmem>>, vector<1x8x1xf32>,
    %c3_97 = arith.constant 3 : index
    %c0_98 = arith.constant 0 : index
    %c0_99 = arith.constant 0 : index
    %145 = vector.load %arg13[%c3_97, %c0_98, %c0_99] : memref<4x8x8xf32, #tpu.memory_space<vmem>>, vector<1x8x8xf32>
    %146 = vector.shape_cast %145 : vector<1x8x8xf32> to vector<8x8xf32>
    %147 = vector.broadcast %131 : vector<8x1xf32> to vector<8x8xf32>
    %148 = arith.mulf %147, %146 : vector<8x8xf32>
    %cst_100 = arith.constant dense<0.000000e+00> : vector<8x8xf32>
    %149 = tpu.matmul %134, %119, %cst_100 {dimension_numbers = #tpu.dot_dimension_numbers<[1], [0], [0], [1], [0, 0, 1, 1], [], []>} : vector<8x8xf32>, vector<8x8xf32>, vector<8x8xf32> -> vector<8x8xf32>
    %150 = arith.addf %148, %149 : vector<8x8xf32>
    %c3_101 = arith.constant 3 : index
    %c0_102 = arith.constant 0 : index
    %c0_103 = arith.constant 0 : index
    %151 = vector.load %arg13[%c3_101, %c0_102, %c0_103] : memref<4x8x8xf32, #tpu.memory_space<vmem>>, vector<1x8x8xf32>
    %152 = vector.shape_cast %151 : vector<1x8x8xf32> to vector<8x8xf32>
    %153 = vector.shape_cast %150 : vector<8x8xf32> to vector<1x8x8xf32>
    tpu.vector_store %arg13[%c3_101, %c0_102, %c0_103], %153 {strides = array<i32>} : memref<4x8x8xf32, #tpu.memory_space<vmem>>, vector<1x8x8xf32>,
    %c0_i32_104 = arith.constant 0 : i32
    %154 = arith.cmpi eq, %arg2, %c0_i32_104 : i32
    %155 = arith.extui %154 : i1 to i32
    %c0_i32_105 = arith.constant 0 : i32
    %156 = arith.cmpi ne, %155, %c0_i32_105 : i32
    scf.if %156 {
      %c0_106 = arith.constant 0 : index
      %c0_107 = arith.constant 0 : index
      %c0_108 = arith.constant 0 : index
      %157 = vector.load %arg15[%c0_106, %c0_107, %c0_108] : memref<4x8x1xf32, #tpu.memory_space<vmem>>, vector<1x8x1xf32>
      %158 = vector.shape_cast %157 : vector<1x8x1xf32> to vector<8x1xf32>
      %159 = tpu.reciprocal %158 : vector<8x1xf32> -> vector<8x1xf32>
      %c0_109 = arith.constant 0 : index
      %c0_110 = arith.constant 0 : index
      %c0_111 = arith.constant 0 : index
      %160 = vector.load %arg13[%c0_109, %c0_110, %c0_111] : memref<4x8x8xf32, #tpu.memory_space<vmem>>, vector<1x8x8xf32>
      %161 = vector.shape_cast %160 : vector<1x8x8xf32> to vector<8x8xf32>
      %162 = vector.broadcast %159 : vector<8x1xf32> to vector<8x8xf32>
      %163 = arith.mulf %161, %162 : vector<8x8xf32>
      %c0_112 = arith.constant 0 : index
      %c0_113 = arith.constant 0 : index
      %c0_114 = arith.constant 0 : index
      %164 = vector.load %arg9[%c0_112, %c0_113, %c0_114] : memref<4x8x32xf32, #tpu.memory_space<vmem>>, vector<1x8x32xf32>
      %165 = vector.shape_cast %164 : vector<1x8x32xf32> to vector<8x32xf32>
      %cst_115 = arith.constant dense<0.000000e+00> : vector<8x32xf32>
      %166 = tpu.matmul %163, %165, %cst_115 {dimension_numbers = #tpu.dot_dimension_numbers<[1], [0], [0], [1], [0, 0, 1, 1], [], []>} : vector<8x8xf32>, vector<8x32xf32>, vector<8x32xf32> -> vector<8x32xf32>
      %c1_116 = arith.constant 1 : index
      %c0_117 = arith.constant 0 : index
      %c0_118 = arith.constant 0 : index
      %167 = vector.load %arg15[%c1_116, %c0_117, %c0_118] : memref<4x8x1xf32, #tpu.memory_space<vmem>>, vector<1x8x1xf32>
      %168 = vector.shape_cast %167 : vector<1x8x1xf32> to vector<8x1xf32>
      %169 = tpu.reciprocal %168 : vector<8x1xf32> -> vector<8x1xf32>
      %c1_119 = arith.constant 1 : index
      %c0_120 = arith.constant 0 : index
      %c0_121 = arith.constant 0 : index
      %170 = vector.load %arg13[%c1_119, %c0_120, %c0_121] : memref<4x8x8xf32, #tpu.memory_space<vmem>>, vector<1x8x8xf32>
      %171 = vector.shape_cast %170 : vector<1x8x8xf32> to vector<8x8xf32>
      %172 = vector.broadcast %169 : vector<8x1xf32> to vector<8x8xf32>
      %173 = arith.mulf %171, %172 : vector<8x8xf32>
      %c1_122 = arith.constant 1 : index
      %c0_123 = arith.constant 0 : index
      %c0_124 = arith.constant 0 : index
      %174 = vector.load %arg9[%c1_122, %c0_123, %c0_124] : memref<4x8x32xf32, #tpu.memory_space<vmem>>, vector<1x8x32xf32>
      %175 = vector.shape_cast %174 : vector<1x8x32xf32> to vector<8x32xf32>
      %cst_125 = arith.constant dense<0.000000e+00> : vector<8x32xf32>
      %176 = tpu.matmul %173, %175, %cst_125 {dimension_numbers = #tpu.dot_dimension_numbers<[1], [0], [0], [1], [0, 0, 1, 1], [], []>} : vector<8x8xf32>, vector<8x32xf32>, vector<8x32xf32> -> vector<8x32xf32>
      %177 = arith.addf %166, %176 : vector<8x32xf32>
      %c2_126 = arith.constant 2 : index
      %c0_127 = arith.constant 0 : index
      %c0_128 = arith.constant 0 : index
      %178 = vector.load %arg15[%c2_126, %c0_127, %c0_128] : memref<4x8x1xf32, #tpu.memory_space<vmem>>, vector<1x8x1xf32>
      %179 = vector.shape_cast %178 : vector<1x8x1xf32> to vector<8x1xf32>
      %180 = tpu.reciprocal %179 : vector<8x1xf32> -> vector<8x1xf32>
      %c2_129 = arith.constant 2 : index
      %c0_130 = arith.constant 0 : index
      %c0_131 = arith.constant 0 : index
      %181 = vector.load %arg13[%c2_129, %c0_130, %c0_131] : memref<4x8x8xf32, #tpu.memory_space<vmem>>, vector<1x8x8xf32>
      %182 = vector.shape_cast %181 : vector<1x8x8xf32> to vector<8x8xf32>
      %183 = vector.broadcast %180 : vector<8x1xf32> to vector<8x8xf32>
      %184 = arith.mulf %182, %183 : vector<8x8xf32>
      %c2_132 = arith.constant 2 : index
      %c0_133 = arith.constant 0 : index
      %c0_134 = arith.constant 0 : index
      %185 = vector.load %arg9[%c2_132, %c0_133, %c0_134] : memref<4x8x32xf32, #tpu.memory_space<vmem>>, vector<1x8x32xf32>
      %186 = vector.shape_cast %185 : vector<1x8x32xf32> to vector<8x32xf32>
      %cst_135 = arith.constant dense<0.000000e+00> : vector<8x32xf32>
      %187 = tpu.matmul %184, %186, %cst_135 {dimension_numbers = #tpu.dot_dimension_numbers<[1], [0], [0], [1], [0, 0, 1, 1], [], []>} : vector<8x8xf32>, vector<8x32xf32>, vector<8x32xf32> -> vector<8x32xf32>
      %188 = arith.addf %177, %187 : vector<8x32xf32>
      %c3_136 = arith.constant 3 : index
      %c0_137 = arith.constant 0 : index
      %c0_138 = arith.constant 0 : index
      %189 = vector.load %arg15[%c3_136, %c0_137, %c0_138] : memref<4x8x1xf32, #tpu.memory_space<vmem>>, vector<1x8x1xf32>
      %190 = vector.shape_cast %189 : vector<1x8x1xf32> to vector<8x1xf32>
      %191 = tpu.reciprocal %190 : vector<8x1xf32> -> vector<8x1xf32>
      %c3_139 = arith.constant 3 : index
      %c0_140 = arith.constant 0 : index
      %c0_141 = arith.constant 0 : index
      %192 = vector.load %arg13[%c3_139, %c0_140, %c0_141] : memref<4x8x8xf32, #tpu.memory_space<vmem>>, vector<1x8x8xf32>
      %193 = vector.shape_cast %192 : vector<1x8x8xf32> to vector<8x8xf32>
      %194 = vector.broadcast %191 : vector<8x1xf32> to vector<8x8xf32>
      %195 = arith.mulf %193, %194 : vector<8x8xf32>
      %c3_142 = arith.constant 3 : index
      %c0_143 = arith.constant 0 : index
      %c0_144 = arith.constant 0 : index
      %196 = vector.load %arg9[%c3_142, %c0_143, %c0_144] : memref<4x8x32xf32, #tpu.memory_space<vmem>>, vector<1x8x32xf32>
      %197 = vector.shape_cast %196 : vector<1x8x32xf32> to vector<8x32xf32>
      %cst_145 = arith.constant dense<0.000000e+00> : vector<8x32xf32>
      %198 = tpu.matmul %195, %197, %cst_145 {dimension_numbers = #tpu.dot_dimension_numbers<[1], [0], [0], [1], [0, 0, 1, 1], [], []>} : vector<8x8xf32>, vector<8x32xf32>, vector<8x32xf32> -> vector<8x32xf32>
      %199 = arith.addf %188, %198 : vector<8x32xf32>
      %c0_146 = arith.constant 0 : index
      %c0_147 = arith.constant 0 : index
      %200 = vector.load %arg10[%c0_146, %c0_147] : memref<1x32xf32, #tpu.memory_space<vmem>>, vector<1x32xf32>
      %201 = vector.broadcast %200 : vector<1x32xf32> to vector<8x32xf32>
      %202 = arith.addf %199, %201 : vector<8x32xf32>
      %c0_148 = arith.constant 0 : index
      %c0_149 = arith.constant 0 : index
      %c0_150 = arith.constant 0 : index
      %203 = vector.load %arg11[%c0_148, %c0_149, %c0_150] : memref<1x8x32xf32, #tpu.memory_space<vmem>>, vector<1x8x32xf32>
      %204 = vector.shape_cast %203 : vector<1x8x32xf32> to vector<8x32xf32>
      %205 = vector.shape_cast %202 : vector<8x32xf32> to vector<1x8x32xf32>
      tpu.vector_store %arg11[%c0_148, %c0_149, %c0_150], %205 {strides = array<i32>} : memref<1x8x32xf32, #tpu.memory_space<vmem>>, vector<1x8x32xf32>,
    } else {
    }
    return
  }
  func.func @transform_0(%arg0: i32, %arg1: i32, %arg2: i32) -> (i32, i32, i32) {
    %c0_i32 = arith.constant 0 : i32
    %c0_i32_0 = arith.constant 0 : i32
    return %arg0, %arg1, %c0_i32 : i32, i32, i32
  }
  func.func @transform_1(%arg0: i32, %arg1: i32, %arg2: i32) -> (i32, i32, i32) {
    %c0_i32 = arith.constant 0 : i32
    %c0_i32_0 = arith.constant 0 : i32
    return %arg0, %arg2, %c0_i32 : i32, i32, i32
  }
  func.func @transform_2(%arg0: i32, %arg1: i32, %arg2: i32) -> (i32, i32) {
    %c0_i32 = arith.constant 0 : i32
    %c0_i32_0 = arith.constant 0 : i32
    %c0_i32_1 = arith.constant 0 : i32
    return %c0_i32, %c0_i32_0 : i32, i32
  }
  func.func @transform_3(%arg0: i32, %arg1: i32, %arg2: i32) -> (i32, i32) {
    %c0_i32 = arith.constant 0 : i32
    %c0_i32_0 = arith.constant 0 : i32
    %c0_i32_1 = arith.constant 0 : i32
    return %c0_i32, %c0_i32_0 : i32, i32
  }
  func.func @transform_4(%arg0: i32, %arg1: i32, %arg2: i32) -> (i32, i32) {
    %c0_i32 = arith.constant 0 : i32
    %c0_i32_0 = arith.constant 0 : i32
    %c0_i32_1 = arith.constant 0 : i32
    return %c0_i32, %c0_i32_0 : i32, i32
  }
  func.func @transform_5(%arg0: i32, %arg1: i32, %arg2: i32) -> (i32, i32) {
    %c0_i32 = arith.constant 0 : i32
    %c0_i32_0 = arith.constant 0 : i32
    %c0_i32_1 = arith.constant 0 : i32
    return %c0_i32, %c0_i32_0 : i32, i32
  }
  func.func @transform_6(%arg0: i32, %arg1: i32, %arg2: i32) -> (i32, i32, i32) {
    %c0_i32 = arith.constant 0 : i32
    %c0_i32_0 = arith.constant 0 : i32
    %c0_i32_1 = arith.constant 0 : i32
    %c0_i32_2 = arith.constant 0 : i32
    return %c0_i32, %c0_i32_0, %c0_i32_1 : i32, i32, i32
  }
  func.func @transform_7(%arg0: i32, %arg1: i32, %arg2: i32) -> (i32, i32) {
    %c0_i32 = arith.constant 0 : i32
    %c0_i32_0 = arith.constant 0 : i32
    %c0_i32_1 = arith.constant 0 : i32
    return %c0_i32, %c0_i32_0 : i32, i32
  }
  func.func @transform_8(%arg0: i32, %arg1: i32, %arg2: i32) -> (i32, i32, i32) {
    %c0_i32 = arith.constant 0 : i32
    %c0_i32_0 = arith.constant 0 : i32
    return %arg0, %arg1, %c0_i32 : i32, i32, i32
  }
}

</mosaic_0001>

<llo_original>
// kernel: tpu_custom_call.1
$region0: #{tpu_custom_call.1}
  #allocation0 [shape = 'u32[]', space=smem, size = 0x4, offset = 0x4, fixed_abs, tag = 'smem constant byte address 0x4 - core index']
  #allocation1 [shape = 'u32[144,128]{1,0:T(1,128)}', space=vmem, size = 0x12000, scoped, tag = 'internal scratch']
  #allocation2 [shape = 'f32[4,8,8]{2,1,0:T(8,128)}', space=vmem, size = 0x4000, scoped, tag = 'scratch operand']
  #allocation3 [shape = 'f32[4,8,8]{2,1,0:T(8,128)}', space=vmem, size = 0x4000, scoped, tag = 'scratch operand']
  #allocation4 [shape = 'f32[4,8,1]{2,1,0:T(8,128)}', space=vmem, size = 0x4000, scoped, tag = 'scratch operand']
  #allocation5 [shape = 'f32[4,8,1]{2,1,0:T(8,128)}', space=vmem, size = 0x4000, scoped, tag = 'scratch operand']
  %s0 = inlined_call_operand.hbm [shape: f32[2,8,32], index: 0, kind: input, shape index: {}]
  %s1 = inlined_call_operand.hbm [shape: f32[2,8,32], index: 1, kind: input, shape index: {}]
  %s2 = inlined_call_operand.hbm [shape: f32[32,32], index: 2, kind: input, shape index: {}]
  %s3 = inlined_call_operand.vmem [shape: f32[1,32], index: 3, kind: input, shape index: {}]
  %s4 = inlined_call_operand.hbm [shape: f32[32,64], index: 4, kind: input, shape index: {}]
  %s5 = inlined_call_operand.vmem [shape: f32[1,64], index: 5, kind: input, shape index: {}]
  %s6 = inlined_call_operand.hbm [shape: f32[4,8,32], index: 6, kind: input, shape index: {}]
  %s7 = inlined_call_operand.vmem [shape: f32[1,32], index: 7, kind: input, shape index: {}]
  %s8 = inlined_call_operand.hbm [shape: f32[2,8,32], index: 8, kind: output, shape index: {}]
  %s9 = sld [smem:[#allocation0]]
  $region93: #{tpu_custom_call.1} parent=0
    _
  %s11 = ssub.s32 1, %s9
  %s12 = scalar_select 0, %s11, %s9
  $region1: #{tpu_custom_call.1} parent=0
    #allocation6 [shape = 'u8[8192]{0}', space=vmem, size = 0x2000, scoped, tag = 'input window, operand 0']
    #allocation7 [shape = 's32[2]{0}', space=sflag, size = 0x8, scoped, tag = 'scoped memory for tpu_custom_call.1']
    #allocation8 [shape = 's32[2]{0}', space=sflag, size = 0x8, scoped, tag = 'scoped memory for tpu_custom_call.1']
    #allocation9 [shape = 'u8[8192]{0}', space=vmem, size = 0x2000, scoped, tag = 'input window, operand 1']
    #allocation10 [shape = 's32[2]{0}', space=sflag, size = 0x8, scoped, tag = 'scoped memory for tpu_custom_call.1']
    #allocation11 [shape = 'u8[16384]{0}', space=vmem, size = 0x4000, scoped, tag = 'input window, operand 2, single buffered']
    #allocation12 [shape = 'u8[16384]{0}', space=vmem, size = 0x4000, scoped, tag = 'input window, operand 4, single buffered']
    #allocation13 [shape = 's32[1]{0}', space=sflag, size = 0x4, scoped, tag = 'scoped memory for tpu_custom_call.1']
    #allocation14 [shape = 'u8[16384]{0}', space=vmem, size = 0x4000, scoped, tag = 'input window, operand 6, single buffered']
    #allocation15 [shape = 'u8[8192]{0}', space=vmem, size = 0x2000, scoped, tag = 'output window, operand 0']
    %13 = vsyncpa [#allocation7], 0
    %s14 = scalar_lea.sflag [#allocation7], 1
    %15 = vsyncpa %s14, 0
    %16 = vsyncpa [#allocation10], 0
    %s17 = scalar_lea.sflag [#allocation10], 1
    %18 = vsyncpa %s17, 0
    %19 = vsyncpa [#allocation13], 0
    %20 = vsyncpa [#allocation8], 0
    %s21 = scalar_lea.sflag [#allocation8], 1
    %22 = vsyncpa %s21, 0
    loop: start=0, step=1, limit=4
    $region2: #{tpu_custom_call.1} parent=1 // loop_pre_header
      _
    $region3: #{tpu_custom_call.1} parent=1 // loop_header
      %s24 = sphi 0, %s28
      %p25 = scmp.ge.s32.totalorder %s24, 4
      %s31 = sphi 0, %s50
      %s32 = sphi 0, %s46
      %s33 = sphi 0, %s42
      %s34 = sphi 0, %s31
      %s35 = sphi 0, %s32
      %s36 = sphi 0, %s33
      %s37 = sphi 0, %s34
      %s38 = sphi 0, %s35
      %s39 = sphi 0, %s36
      %s55 = sphi 0, %s57
      %s58 = sphi 0, %s55
      %s59 = sphi 0, %s58
      %s75 = sphi 0, %s59
      %s83 = sphi 0, %s85
      %s86 = sphi 0, %s83
      %s87 = sphi 0, %s86
      %s103 = sphi 0, %s87
      %s107 = sphi 0, %s107
      %s109 = sphi 0, %s107
      %s110 = sphi 0, %s109
      %s124 = sphi 0, %s110
      %s128 = sphi 0, %s128
      %s130 = sphi 0, %s128
      %s131 = sphi 0, %s130
      %s145 = sphi 0, %s131
      %s149 = sphi 0, %s149
      %s151 = sphi 0, %s149
      %s152 = sphi 0, %s151
      %s166 = sphi 0, %s152
      %s170 = sphi 0, %s170
      %s172 = sphi 0, %s170
      %s173 = sphi 0, %s172
      %s187 = sphi 0, %s173
      %s191 = sphi 0, %s191
      %s193 = sphi 0, %s191
      %s194 = sphi 0, %s193
      %s208 = sphi 0, %s194
      %s212 = sphi 0, %s212
      %s214 = sphi 0, %s212
      %s215 = sphi 0, %s214
      %s229 = sphi 0, %s215
      %s237 = sphi 0, %s239
      %s240 = sphi 0, %s237
      %s241 = sphi 0, %s240
      %s257 = sphi 0, %s241
    $region4: #{tpu_custom_call.1} parent=1 // loop_header_branch
      %27 = sbr.rel (%p25) target = $region8
    $region5: #{tpu_custom_call.1} parent=1 // loop_body
      %s29 = ssub.s32 %s24, 1
      %s30 = ssub.s32 %s24, 2
      %s40 = sadd.s32 1, %s33
      %p41 = scmp.ge.s32.totalorder %s40, 1
      %s42 = scalar_select %p41, 0, %s40
      %s43 = sadd.s32 1, %s32
      %s44 = scalar_select %p41, %s43, %s32
      %p45 = scmp.ge.s32.totalorder %s44, 1
      %s46 = scalar_select %p45, 0, %s44
      %s47 = sadd.s32 1, %s31
      %s48 = scalar_select %p45, %s47, %s31
      %p49 = scmp.ge.s32.totalorder %s48, 2
      %s50 = scalar_select %p49, 0, %s48
      %s51 = ssub.s32 %s31, %s50
      %s52 = ssub.s32 %s32, %s46
      %s53 = sor.u32 %s51, %s52
      %p54 = scmp.eq.s32.totalorder %s53, 0
      %s56 = sadd.s32 %s55, 1
      %s57 = scalar_select %p54, %s55, %s56
      %p60 = pneg %p54
      %p61 = scmp.eq.s32.totalorder %s24, 1
      %p62 = por %p60, %p61
      %p63 = scmp.ne.s32.totalorder %s55, %s58
      %p64 = scmp.eq.s32.totalorder %s24, 0
      %p65 = por %p63, %p64
      %p66 = scmp.ne.s32.totalorder %s55, %s58
      %p67 = scmp.eq.s32.totalorder %s29, 1
      %p68 = por %p66, %p67
      %p69 = scmp.ne.s32.totalorder %s58, %s59
      %p70 = scmp.eq.s32.totalorder %s29, 0
      %p71 = por %p69, %p70
      %p72 = scmp.ne.s32.totalorder %s58, %s59
      %p73 = scmp.eq.s32.totalorder %s30, 1
      %p74 = por %p72, %p73
      %p76 = scmp.ne.s32.totalorder %s59, %s75
      %p77 = scmp.eq.s32.totalorder %s30, 0
      %p78 = por %p76, %p77
      %s79 = ssub.s32 %s31, %s50
      %s80 = ssub.s32 %s33, %s42
      %s81 = sor.u32 %s79, %s80
      %p82 = scmp.eq.s32.totalorder %s81, 0
      %s84 = sadd.s32 %s83, 1
      %s85 = scalar_select %p82, %s83, %s84
      %p88 = pneg %p82
      %p89 = scmp.eq.s32.totalorder %s24, 1
      %p90 = por %p88, %p89
      %p91 = scmp.ne.s32.totalorder %s83, %s86
      %p92 = scmp.eq.s32.totalorder %s24, 0
      %p93 = por %p91, %p92
      %p94 = scmp.ne.s32.totalorder %s83, %s86
      %p95 = scmp.eq.s32.totalorder %s29, 1
      %p96 = por %p94, %p95
      %p97 = scmp.ne.s32.totalorder %s86, %s87
      %p98 = scmp.eq.s32.totalorder %s29, 0
      %p99 = por %p97, %p98
      %p100 = scmp.ne.s32.totalorder %s86, %s87
      %p101 = scmp.eq.s32.totalorder %s30, 1
      %p102 = por %p100, %p101
      %p104 = scmp.ne.s32.totalorder %s87, %s103
      %p105 = scmp.eq.s32.totalorder %s30, 0
      %p106 = por %p104, %p105
      %s108 = sadd.s32 %s107, 1
      %p111 = scmp.eq.s32.totalorder %s24, 1
      %p112 = scmp.ne.s32.totalorder %s107, %s109
      %p113 = scmp.eq.s32.totalorder %s24, 0
      %p114 = por %p112, %p113
      %p115 = scmp.ne.s32.totalorder %s107, %s109
      %p116 = scmp.eq.s32.totalorder %s29, 1
      %p117 = por %p115, %p116
      %p118 = scmp.ne.s32.totalorder %s109, %s110
      %p119 = scmp.eq.s32.totalorder %s29, 0
      %p120 = por %p118, %p119
      %p121 = scmp.ne.s32.totalorder %s109, %s110
      %p122 = scmp.eq.s32.totalorder %s30, 1
      %p123 = por %p121, %p122
      %p125 = scmp.ne.s32.totalorder %s110, %s124
      %p126 = scmp.eq.s32.totalorder %s30, 0
      %p127 = por %p125, %p126
      %s129 = sadd.s32 %s128, 1
      %p132 = scmp.eq.s32.totalorder %s24, 1
      %p133 = scmp.ne.s32.totalorder %s128, %s130
      %p134 = scmp.eq.s32.totalorder %s24, 0
      %p135 = por %p133, %p134
      %p136 = scmp.ne.s32.totalorder %s128, %s130
      %p137 = scmp.eq.s32.totalorder %s29, 1
      %p138 = por %p136, %p137
      %p139 = scmp.ne.s32.totalorder %s130, %s131
      %p140 = scmp.eq.s32.totalorder %s29, 0
      %p141 = por %p139, %p140
      %p142 = scmp.ne.s32.totalorder %s130, %s131
      %p143 = scmp.eq.s32.totalorder %s30, 1
      %p144 = por %p142, %p143
      %p146 = scmp.ne.s32.totalorder %s131, %s145
      %p147 = scmp.eq.s32.totalorder %s30, 0
      %p148 = por %p146, %p147
      %s150 = sadd.s32 %s149, 1
      %p153 = scmp.eq.s32.totalorder %s24, 1
      %p154 = scmp.ne.s32.totalorder %s149, %s151
      %p155 = scmp.eq.s32.totalorder %s24, 0
      %p156 = por %p154, %p155
      %p157 = scmp.ne.s32.totalorder %s149, %s151
      %p158 = scmp.eq.s32.totalorder %s29, 1
      %p159 = por %p157, %p158
      %p160 = scmp.ne.s32.totalorder %s151, %s152
      %p161 = scmp.eq.s32.totalorder %s29, 0
      %p162 = por %p160, %p161
      %p163 = scmp.ne.s32.totalorder %s151, %s152
      %p164 = scmp.eq.s32.totalorder %s30, 1
      %p165 = por %p163, %p164
      %p167 = scmp.ne.s32.totalorder %s152, %s166
      %p168 = scmp.eq.s32.totalorder %s30, 0
      %p169 = por %p167, %p168
      %s171 = sadd.s32 %s170, 1
      %p174 = scmp.eq.s32.totalorder %s24, 1
      %p175 = scmp.ne.s32.totalorder %s170, %s172
      %p176 = scmp.eq.s32.totalorder %s24, 0
      %p177 = por %p175, %p176
      %p178 = scmp.ne.s32.totalorder %s170, %s172
      %p179 = scmp.eq.s32.totalorder %s29, 1
      %p180 = por %p178, %p179
      %p181 = scmp.ne.s32.totalorder %s172, %s173
      %p182 = scmp.eq.s32.totalorder %s29, 0
      %p183 = por %p181, %p182
      %p184 = scmp.ne.s32.totalorder %s172, %s173
      %p185 = scmp.eq.s32.totalorder %s30, 1
      %p186 = por %p184, %p185
      %p188 = scmp.ne.s32.totalorder %s173, %s187
      %p189 = scmp.eq.s32.totalorder %s30, 0
      %p190 = por %p188, %p189
      %s192 = sadd.s32 %s191, 1
      %p195 = scmp.eq.s32.totalorder %s24, 1
      %p196 = scmp.ne.s32.totalorder %s191, %s193
      %p197 = scmp.eq.s32.totalorder %s24, 0
      %p198 = por %p196, %p197
      %p199 = scmp.ne.s32.totalorder %s191, %s193
      %p200 = scmp.eq.s32.totalorder %s29, 1
      %p201 = por %p199, %p200
      %p202 = scmp.ne.s32.totalorder %s193, %s194
      %p203 = scmp.eq.s32.totalorder %s29, 0
      %p204 = por %p202, %p203
      %p205 = scmp.ne.s32.totalorder %s193, %s194
      %p206 = scmp.eq.s32.totalorder %s30, 1
      %p207 = por %p205, %p206
      %p209 = scmp.ne.s32.totalorder %s194, %s208
      %p210 = scmp.eq.s32.totalorder %s30, 0
      %p211 = por %p209, %p210
      %s213 = sadd.s32 %s212, 1
      %p216 = scmp.eq.s32.totalorder %s24, 1
      %p217 = scmp.ne.s32.totalorder %s212, %s214
      %p218 = scmp.eq.s32.totalorder %s24, 0
      %p219 = por %p217, %p218
      %p220 = scmp.ne.s32.totalorder %s212, %s214
      %p221 = scmp.eq.s32.totalorder %s29, 1
      %p222 = por %p220, %p221
      %p223 = scmp.ne.s32.totalorder %s214, %s215
      %p224 = scmp.eq.s32.totalorder %s29, 0
      %p225 = por %p223, %p224
      %p226 = scmp.ne.s32.totalorder %s214, %s215
      %p227 = scmp.eq.s32.totalorder %s30, 1
      %p228 = por %p226, %p227
      %p230 = scmp.ne.s32.totalorder %s215, %s229
      %p231 = scmp.eq.s32.totalorder %s30, 0
      %p232 = por %p230, %p231
      %s233 = ssub.s32 %s31, %s50
      %s234 = ssub.s32 %s32, %s46
      %s235 = sor.u32 %s233, %s234
      %p236 = scmp.eq.s32.totalorder %s235, 0
      %s238 = sadd.s32 %s237, 1
      %s239 = scalar_select %p236, %s237, %s238
      %p242 = pneg %p236
      %p243 = scmp.eq.s32.totalorder %s24, 1
      %p244 = por %p242, %p243
      %p245 = scmp.ne.s32.totalorder %s237, %s240
      %p246 = scmp.eq.s32.totalorder %s24, 0
      %p247 = por %p245, %p246
      %p248 = scmp.ne.s32.totalorder %s237, %s240
      %p249 = scmp.eq.s32.totalorder %s29, 1
      %p250 = por %p248, %p249
      %p251 = scmp.ne.s32.totalorder %s240, %s241
      %p252 = scmp.eq.s32.totalorder %s29, 0
      %p253 = por %p251, %p252
      %p254 = scmp.ne.s32.totalorder %s240, %s241
      %p255 = scmp.eq.s32.totalorder %s30, 1
      %p256 = por %p254, %p255
      %p258 = scmp.ne.s32.totalorder %s241, %s257
      %p259 = scmp.eq.s32.totalorder %s30, 0
      %p260 = por %p258, %p259
      %p261 = scmp.le.s32.totalorder 1, %s24
      %p262 = scmp.lt.s32.totalorder %s24, 3
      %p263 = pnand %p261, %p262
      %p264 = pneg %p263
      // Predicated region
      $region9: #{tpu_custom_call.1} parent=5 // pred_check
        _
      $region10: #{tpu_custom_call.1} parent=5 // pred_check_branch
        %266 = sbr.rel (%p263) target = $region12
      $region11: #{tpu_custom_call.1} parent=5 // pred_region
        %s267 = ssub.s32 %s24, 1
        // Predicated region
        $region13: #{tpu_custom_call.1} parent=11 // pred_check
          %p268 = pneg %p120
        $region14: #{tpu_custom_call.1} parent=11 // pred_check_branch
          %270 = sbr.rel (%p268) target = $region16
        $region15: #{tpu_custom_call.1} parent=11 // pred_region
          %s272 = ssub.s32 512, 512
          %273 = vsyncadd [#allocation10], %s272
          %s274 = sshll.u32 [#allocation11], 4
          %s275 = int_to_ptr.vmem [resolvable:$true] %s274
          %280 = dma.hbm_to_vmem [thread:$0]  %s2, 512, %s275, [#allocation10], 128, 128, 8
        $region16: #{tpu_custom_call.1} parent=11 // pred_fallthru
          _
        // Predicated region
        $region17: #{tpu_custom_call.1} parent=11 // pred_check
          %p281 = pneg %p141
        $region18: #{tpu_custom_call.1} parent=11 // pred_check_branch
          %283 = sbr.rel (%p281) target = $region20
        $region19: #{tpu_custom_call.1} parent=11 // pred_region
          _
        $region20: #{tpu_custom_call.1} parent=11 // pred_fallthru
          _
        // Predicated region
        $region21: #{tpu_custom_call.1} parent=11 // pred_check
          %p284 = pneg %p162
        $region22: #{tpu_custom_call.1} parent=11 // pred_check_branch
          %286 = sbr.rel (%p284) target = $region24
        $region23: #{tpu_custom_call.1} parent=11 // pred_region
          %s288 = ssub.s32 512, 512
          %289 = vsyncadd [#allocation13], %s288
          %s290 = sshll.u32 [#allocation12], 4
          %s291 = int_to_ptr.vmem [resolvable:$true] %s290
          %296 = dma.hbm_to_vmem [thread:$0]  %s4, 512, %s291, [#allocation13], 128, 128, 8
        $region24: #{tpu_custom_call.1} parent=11 // pred_fallthru
          _
        // Predicated region
        $region25: #{tpu_custom_call.1} parent=11 // pred_check
          %p297 = pneg %p183
        $region26: #{tpu_custom_call.1} parent=11 // pred_check_branch
          %299 = sbr.rel (%p297) target = $region28
        $region27: #{tpu_custom_call.1} parent=11 // pred_region
          _
        $region28: #{tpu_custom_call.1} parent=11 // pred_fallthru
          _
        // Predicated region
        $region29: #{tpu_custom_call.1} parent=11 // pred_check
          %p300 = pneg %p204
        $region30: #{tpu_custom_call.1} parent=11 // pred_check_branch
          %302 = sbr.rel (%p300) target = $region32
        $region31: #{tpu_custom_call.1} parent=11 // pred_region
          %s304 = ssub.s32 512, 512
          %305 = vsyncadd [#allocation13], %s304
          %s306 = sshll.u32 [#allocation14], 4
          %s307 = int_to_ptr.vmem [resolvable:$true] %s306
          %312 = dma.hbm_to_vmem [thread:$0]  %s6, 512, %s307, [#allocation13], 128, 128, 8
        $region32: #{tpu_custom_call.1} parent=11 // pred_fallthru
          _
        // Predicated region
        $region33: #{tpu_custom_call.1} parent=11 // pred_check
          %p313 = pneg %p225
        $region34: #{tpu_custom_call.1} parent=11 // pred_check_branch
          %315 = sbr.rel (%p313) target = $region36
        $region35: #{tpu_custom_call.1} parent=11 // pred_region
          _
        $region36: #{tpu_custom_call.1} parent=11 // pred_fallthru
          _
      $region12: #{tpu_custom_call.1} parent=5 // pred_fallthru
        _
      %p316 = scmp.lt.s32.totalorder %s24, 2
      // Predicated region
      $region37: #{tpu_custom_call.1} parent=5 // pred_check
        %p317 = pneg %p316
      $region38: #{tpu_custom_call.1} parent=5 // pred_check_branch
        %319 = sbr.rel (%p317) target = $region40
      $region39: #{tpu_custom_call.1} parent=5 // pred_region
        // Predicated region
        $region41: #{tpu_custom_call.1} parent=39 // pred_check
          %p320 = pneg %p65
        $region42: #{tpu_custom_call.1} parent=39 // pred_check_branch
          %322 = sbr.rel (%p320) target = $region44
        $region43: #{tpu_custom_call.1} parent=39 // pred_region
          %s323 = sand.u32 %s55, 1
          %s324 = scalar_lea.sflag [#allocation7], %s323
          %s325 = sand.u32 %s55, 1
          %s326 = smul.addr %s325, 8
          %s327 = scalar_lea.vmem [#allocation6], %s326
          %s329 = ssub.s32 128, 128
          %330 = vsyncadd %s324, %s329
          %s331 = sadd.s32 %s32, %s31
          %s332 = smul.addr %s331, 128
          %s333 = scalar_lea.hbm %s0, %s332
          %s335 = sshll.u32 %s327, 4
          %s336 = int_to_ptr.vmem [resolvable:$true] %s335
          %338 = dma.hbm_to_vmem [thread:$0]  %s333, 128, %s336, %s324
        $region44: #{tpu_custom_call.1} parent=39 // pred_fallthru
          _
        // Predicated region
        $region45: #{tpu_custom_call.1} parent=39 // pred_check
          %p339 = pneg %p93
        $region46: #{tpu_custom_call.1} parent=39 // pred_check_branch
          %341 = sbr.rel (%p339) target = $region48
        $region47: #{tpu_custom_call.1} parent=39 // pred_region
          %s342 = sand.u32 %s24, 1
          %s343 = scalar_lea.sflag [#allocation10], %s342
          %s344 = sand.u32 %s83, 1
          %s345 = smul.addr %s344, 8
          %s346 = scalar_lea.vmem [#allocation9], %s345
          %s348 = ssub.s32 128, 128
          %349 = vsyncadd %s343, %s348
          %s350 = sadd.s32 %s33, %s31
          %s351 = smul.addr %s350, 128
          %s352 = scalar_lea.hbm %s1, %s351
          %s354 = sshll.u32 %s346, 4
          %s355 = int_to_ptr.vmem [resolvable:$true] %s354
          %357 = dma.hbm_to_vmem [thread:$0]  %s352, 128, %s355, %s343
        $region48: #{tpu_custom_call.1} parent=39 // pred_fallthru
          _
      $region40: #{tpu_custom_call.1} parent=5 // pred_fallthru
        _
      %p358 = scmp.le.s32.totalorder 1, %s24
      %p359 = scmp.lt.s32.totalorder %s24, 3
      %p360 = pnand %p358, %p359
      %p361 = pneg %p360
      // Predicated region
      $region49: #{tpu_custom_call.1} parent=5 // pred_check
        _
      $region50: #{tpu_custom_call.1} parent=5 // pred_check_branch
        %363 = sbr.rel (%p360) target = $region52
      $region51: #{tpu_custom_call.1} parent=5 // pred_region
        %s364 = ssub.s32 %s24, 1
        %s365 = sand.u32 %s58, 1
        %s366 = scalar_lea.sflag [#allocation7], %s365
        %s367 = sand.u32 %s58, 1
        %s368 = smul.addr %s367, 8
        %s369 = scalar_lea.vmem [#allocation6], %s368
        // Predicated region
        $region53: #{tpu_custom_call.1} parent=51 // pred_check
          %p370 = pneg %p71
        $region54: #{tpu_custom_call.1} parent=51 // pred_check_branch
          %372 = sbr.rel (%p370) target = $region56
        $region55: #{tpu_custom_call.1} parent=51 // pred_region
          %373 = dma.done %s366, 128
        $region56: #{tpu_custom_call.1} parent=51 // pred_fallthru
          _
        %s374 = sand.u32 %s29, 1
        %s375 = scalar_lea.sflag [#allocation10], %s374
        %s376 = sand.u32 %s86, 1
        %s377 = smul.addr %s376, 8
        %s378 = scalar_lea.vmem [#allocation9], %s377
        // Predicated region
        $region57: #{tpu_custom_call.1} parent=51 // pred_check
          %p379 = pneg %p99
        $region58: #{tpu_custom_call.1} parent=51 // pred_check_branch
          %381 = sbr.rel (%p379) target = $region60
        $region59: #{tpu_custom_call.1} parent=51 // pred_region
          %382 = dma.done %s375, 128
        $region60: #{tpu_custom_call.1} parent=51 // pred_fallthru
          _
        // Predicated region
        $region61: #{tpu_custom_call.1} parent=51 // pred_check
          %p383 = pneg %p120
        $region62: #{tpu_custom_call.1} parent=51 // pred_check_branch
          %385 = sbr.rel (%p383) target = $region64
        $region63: #{tpu_custom_call.1} parent=51 // pred_region
          %386 = dma.done [#allocation10], 512
        $region64: #{tpu_custom_call.1} parent=51 // pred_fallthru
          _
        // Predicated region
        $region65: #{tpu_custom_call.1} parent=51 // pred_check
          %p387 = pneg %p162
        $region66: #{tpu_custom_call.1} parent=51 // pred_check_branch
          %389 = sbr.rel (%p387) target = $region68
        $region67: #{tpu_custom_call.1} parent=51 // pred_region
          %390 = dma.done [#allocation13], 512
        $region68: #{tpu_custom_call.1} parent=51 // pred_fallthru
          _
        // Predicated region
        $region69: #{tpu_custom_call.1} parent=51 // pred_check
          %p391 = pneg %p204
        $region70: #{tpu_custom_call.1} parent=51 // pred_check_branch
          %393 = sbr.rel (%p391) target = $region72
        $region71: #{tpu_custom_call.1} parent=51 // pred_region
          %394 = dma.done [#allocation13], 512
        $region72: #{tpu_custom_call.1} parent=51 // pred_fallthru
          _
        %s395 = sand.u32 %s58, 1
        %s396 = scalar_lea.sflag [#allocation7], %s395
        %s397 = sand.u32 %s58, 1
        %s398 = smul.addr %s397, 8
        %s399 = scalar_lea.vmem [#allocation6], %s398
        %p400 = pneg %p71
        %p401 = pneg %p68
        %s402 = sand.u32 %s29, 1
        %s403 = scalar_lea.sflag [#allocation10], %s402
        %s404 = sand.u32 %s86, 1
        %s405 = smul.addr %s404, 8
        %s406 = scalar_lea.vmem [#allocation9], %s405
        %p407 = pneg %p99
        %p408 = pneg %p96
        %p409 = pneg %p120
        %p410 = pneg %p117
        %p411 = pneg %p141
        %p412 = pneg %p138
        %p413 = pneg %p162
        %p414 = pneg %p159
        %p415 = pneg %p183
        %p416 = pneg %p180
        %p417 = pneg %p204
        %p418 = pneg %p201
        %p419 = pneg %p225
        %p420 = pneg %p222
        %p421 = pneg %p253
        %p422 = pneg %p250
        %s423 = sand.u32 %s240, 1
        %s424 = scalar_lea.sflag [#allocation8], %s423
        %s425 = sand.u32 %s240, 1
        %s426 = smul.addr %s425, 8
        %s427 = scalar_lea.vmem [#allocation15], %s426
        %p428 = scmp.eq.s32.totalorder %s36, 0
        // Predicated region
        $region73: #{tpu_custom_call.1} parent=51 // pred_check
          %p429 = pneg %p428
        $region74: #{tpu_custom_call.1} parent=51 // pred_check_branch
          %431 = sbr.rel (%p429) target = $region76
        $region75: #{tpu_custom_call.1} parent=51 // pred_region
          %vm432 = vcmask 7168
          %433 = vst.msk [vmem:[#allocation4] sm:$0xff] %vm432, -1e+30
          %434 = vst.msk [vmem:[#allocation4 + $0x8] sm:$0xff] %vm432, -1e+30
          %435 = vst.msk [vmem:[#allocation4 + $0x10] sm:$0xff] %vm432, -1e+30
          %436 = vst.msk [vmem:[#allocation4 + $0x18] sm:$0xff] %vm432, -1e+30
          %437 = vst.msk [vmem:[#allocation5] sm:$0xff] %vm432, 0.0
          %438 = vst.msk [vmem:[#allocation5 + $0x8] sm:$0xff] %vm432, 0.0
          %439 = vst.msk [vmem:[#allocation5 + $0x10] sm:$0xff] %vm432, 0.0
          %440 = vst.msk [vmem:[#allocation5 + $0x18] sm:$0xff] %vm432, 0.0
          %vm441 = vcmask 64512
          %442 = vst.msk [vmem:[#allocation3] sm:$0xff] %vm441, 0.0
          %443 = vst.msk [vmem:[#allocation3 + $0x8] sm:$0xff] %vm441, 0.0
          %444 = vst.msk [vmem:[#allocation3 + $0x10] sm:$0xff] %vm441, 0.0
          %445 = vst.msk [vmem:[#allocation3 + $0x18] sm:$0xff] %vm441, 0.0
          %v446 = vld [vmem:[%s369] sm:$0xff]
          %v447 = vld [vmem:[#allocation11] sm:$0xff]
          %v448 = vld [vmem:[#allocation11 + $0x8] sm:$0xff]
          %v449 = vld [vmem:[#allocation11 + $0x10] sm:$0xff]
          %v450 = vld [vmem:[#allocation11 + $0x18] sm:$0xff]
          %v451 = vld [vmem:[%s3] sm:$0x1]
          %v453 = vlaneseq
          %v454 = vshrl.u32 %v453, 7
          %v455 = vsub.s32 0, %v454
          %v456 = vrot.slane %v451, %v455
          %vm458 = vcmask 261120
          %v460 = vsel %vm458, %v446, 0
          %462 = vmatprep.subr.mxu0 0.0
          %463 = vmatpush1.msra.mxu0 %v447
          %464 = vmatprep.subr.mxu0 0.0
          %465 = vmatpush1.msra.mxu0 %v448
          %466 = vmatprep.subr.mxu0 0.0
          %467 = vmatpush1.msra.mxu0 %v449
          %468 = vmatprep.subr.mxu0 0.0
          %469 = vmatpush1.msra.mxu0 %v450
          %470 = vmatprep.subr.mxu0 0.0
          %471 = vmatpush1.msra.mxu0 0.0
          %472 = vmatprep.subr.mxu0 0.0
          %473 = vmatpush1.msra.mxu0 0.0
          %474 = vmatprep.subr.mxu0 0.0
          %475 = vmatpush1.msra.mxu0 0.0
          %476 = vmatprep.subr.mxu0 0.0
          %477 = vmatpush1.msra.mxu0 0.0
          %478 = vmatprep.subr.mxu0 0.0
          %479 = vmatpush1.msra.mxu0 0.0
          %480 = vmatprep.subr.mxu0 0.0
          %481 = vmatpush1.msra.mxu0 0.0
          %482 = vmatprep.subr.mxu0 0.0
          %483 = vmatpush1.msra.mxu0 0.0
          %484 = vmatprep.subr.mxu0 0.0
          %485 = vmatpush1.msra.mxu0 0.0
          %486 = vmatprep.subr.mxu0 0.0
          %487 = vmatpush1.msra.mxu0 0.0
          %488 = vmatprep.subr.mxu0 0.0
          %489 = vmatpush1.msra.mxu0 0.0
          %490 = vmatprep.subr.mxu0 0.0
          %491 = vmatpush1.msra.mxu0 0.0
          %492 = vmatprep.subr.mxu0 0.0
          %493 = vmatpush1.msra.mxu0 0.0
          %494 = vmatprep.subr.mxu0 0.0
          %495 = vmatpush1.msra.mxu0 0.0
          %496 = vmatprep.subr.mxu0 0.0
          %497 = vmatpush1.msra.mxu0 0.0
          %498 = vmatprep.subr.mxu0 0.0
          %499 = vmatpush1.msra.mxu0 0.0
          %500 = vmatprep.subr.mxu0 0.0
          %501 = vmatpush1.msra.mxu0 0.0
          %502 = vmatprep.subr.mxu0 0.0
          %503 = vmatpush1.msra.mxu0 0.0
          %504 = vmatprep.subr.mxu0 0.0
          %505 = vmatpush1.msra.mxu0 0.0
          %506 = vmatprep.subr.mxu0 0.0
          %507 = vmatpush1.msra.mxu0 0.0
          %508 = vmatprep.subr.mxu0 0.0
          %509 = vmatpush1.msra.mxu0 0.0
          %510 = vmatprep.subr.mxu0 0.0
          %511 = vmatpush1.msra.mxu0 0.0
          %512 = vmatprep.subr.mxu0 0.0
          %513 = vmatpush1.msra.mxu0 0.0
          %514 = vmatprep.subr.mxu0 0.0
          %515 = vmatpush1.msra.mxu0 0.0
          %516 = vmatprep.subr.mxu0 0.0
          %517 = vmatpush1.msra.mxu0 0.0
          %518 = vmatprep.subr.mxu0 0.0
          %519 = vmatpush1.msra.mxu0 0.0
          %520 = vmatprep.subr.mxu0 0.0
          %521 = vmatpush1.msra.mxu0 0.0
          %522 = vmatprep.subr.mxu0 0.0
          %523 = vmatpush1.msra.mxu0 0.0
          %524 = vmatprep.subr.mxu0 0.0
          %525 = vmatpush1.msra.mxu0 0.0
          %526 = vmatprep.mubr.f32.mxu0 0.0
          %527 = vmatmul.mubr.f32.gmra.mrb[0].mxu0 %v460
          %v528 = vpop.f32.mrb[0].mxu0
          %v529 = vadd.f32 %v456, %v528
          %v530 = vpop.f32.mrb[0].mxu0
          %531 = vdwg.mxu0
          %v532 = vmul.f32 %v529, 0.35355338
          %533 = vst.msk [vmem:[#allocation2] sm:$0xff] %vm441, %v532
          %535 = vrot.lane.b32.xlu0 %v532, 120
          %v536 = vpop.permute.xlu0 %535
          %s538 = scalar_lea.vmem [#allocation2], 8
          %539 = vst.msk [vmem:[%s538] sm:$0xff] %vm441, %v536
          %540 = vrot.lane.b32.xlu0 %v532, 112
          %v541 = vpop.permute.xlu0 %540
          %s543 = scalar_lea.vmem [#allocation2], 16
          %544 = vst.msk [vmem:[%s543] sm:$0xff] %vm441, %v541
          %545 = vrot.lane.b32.xlu0 %v532, 104
          %v546 = vpop.permute.xlu0 %545
          %s548 = scalar_lea.vmem [#allocation2], 24
          %549 = vst.msk [vmem:[%s548] sm:$0xff] %vm441, %v546
        $region76: #{tpu_custom_call.1} parent=51 // pred_fallthru
          _
        %v550 = vld [vmem:[%s378] sm:$0xff]
        %v551 = vld [vmem:[#allocation12] sm:$0xff]
        %v552 = vld [vmem:[#allocation12 + $0x8] sm:$0xff]
        %v553 = vld [vmem:[#allocation12 + $0x10] sm:$0xff]
        %v554 = vld [vmem:[#allocation12 + $0x18] sm:$0xff]
        %v555 = vld [vmem:[%s5] sm:$0x1]
        %v557 = vlaneseq
        %v558 = vshrl.u32 %v557, 7
        %v559 = vsub.s32 0, %v558
        %v560 = vrot.slane %v555, %v559
        %vm562 = vcmask 261120
        %v564 = vsel %vm562, %v550, 0
        %566 = vmatprep.subr.mxu0 0.0
        %567 = vmatpush1.msra.mxu0 %v551
        %568 = vmatprep.subr.mxu0 0.0
        %569 = vmatpush1.msra.mxu0 %v552
        %570 = vmatprep.subr.mxu0 0.0
        %571 = vmatpush1.msra.mxu0 %v553
        %572 = vmatprep.subr.mxu0 0.0
        %573 = vmatpush1.msra.mxu0 %v554
        %574 = vmatprep.subr.mxu0 0.0
        %575 = vmatpush1.msra.mxu0 0.0
        %576 = vmatprep.subr.mxu0 0.0
        %577 = vmatpush1.msra.mxu0 0.0
        %578 = vmatprep.subr.mxu0 0.0
        %579 = vmatpush1.msra.mxu0 0.0
        %580 = vmatprep.subr.mxu0 0.0
        %581 = vmatpush1.msra.mxu0 0.0
        %582 = vmatprep.subr.mxu0 0.0
        %583 = vmatpush1.msra.mxu0 0.0
        %584 = vmatprep.subr.mxu0 0.0
        %585 = vmatpush1.msra.mxu0 0.0
        %586 = vmatprep.subr.mxu0 0.0
        %587 = vmatpush1.msra.mxu0 0.0
        %588 = vmatprep.subr.mxu0 0.0
        %589 = vmatpush1.msra.mxu0 0.0
        %590 = vmatprep.subr.mxu0 0.0
        %591 = vmatpush1.msra.mxu0 0.0
        %592 = vmatprep.subr.mxu0 0.0
        %593 = vmatpush1.msra.mxu0 0.0
        %594 = vmatprep.subr.mxu0 0.0
        %595 = vmatpush1.msra.mxu0 0.0
        %596 = vmatprep.subr.mxu0 0.0
        %597 = vmatpush1.msra.mxu0 0.0
        %598 = vmatprep.subr.mxu0 0.0
        %599 = vmatpush1.msra.mxu0 0.0
        %600 = vmatprep.subr.mxu0 0.0
        %601 = vmatpush1.msra.mxu0 0.0
        %602 = vmatprep.subr.mxu0 0.0
        %603 = vmatpush1.msra.mxu0 0.0
        %604 = vmatprep.subr.mxu0 0.0
        %605 = vmatpush1.msra.mxu0 0.0
        %606 = vmatprep.subr.mxu0 0.0
        %607 = vmatpush1.msra.mxu0 0.0
        %608 = vmatprep.subr.mxu0 0.0
        %609 = vmatpush1.msra.mxu0 0.0
        %610 = vmatprep.subr.mxu0 0.0
        %611 = vmatpush1.msra.mxu0 0.0
        %612 = vmatprep.subr.mxu0 0.0
        %613 = vmatpush1.msra.mxu0 0.0
        %614 = vmatprep.subr.mxu0 0.0
        %615 = vmatpush1.msra.mxu0 0.0
        %616 = vmatprep.subr.mxu0 0.0
        %617 = vmatpush1.msra.mxu0 0.0
        %618 = vmatprep.subr.mxu0 0.0
        %619 = vmatpush1.msra.mxu0 0.0
        %620 = vmatprep.subr.mxu0 0.0
        %621 = vmatpush1.msra.mxu0 0.0
        %622 = vmatprep.subr.mxu0 0.0
        %623 = vmatpush1.msra.mxu0 0.0
        %624 = vmatprep.subr.mxu0 0.0
        %625 = vmatpush1.msra.mxu0 0.0
        %626 = vmatprep.subr.mxu0 0.0
        %627 = vmatpush1.msra.mxu0 0.0
        %628 = vmatprep.subr.mxu0 0.0
        %629 = vmatpush1.msra.mxu0 0.0
        %630 = vmatprep.mubr.f32.mxu0 0.0
        %631 = vmatmul.mubr.f32.gmra.mrb[0].mxu0 %v564
        %v632 = vpop.f32.mrb[0].mxu0
        %v633 = vadd.f32 %v560, %v632
        %v634 = vpop.f32.mrb[0].mxu0
        %635 = vdwg.mxu0
        %v636 = vld [vmem:[#allocation2] sm:$0xff]
        %vm637 = vcmask 64512
        %v639 = vsel %vm637, %v636, 0
        %v642 = vsel %vm637, %v633, 0
        %644 = vmatprep.subr.mxu0 0.0
        %645 = vmatpush1.xpose.msra.mxu0 %v642
        %646 = vmatprep.subr.mxu0 0.0
        %647 = vmatpush1.xpose.msra.mxu0 0.0
        %648 = vmatprep.subr.mxu0 0.0
        %649 = vmatpush1.xpose.msra.mxu0 0.0
        %650 = vmatprep.subr.mxu0 0.0
        %651 = vmatpush1.xpose.msra.mxu0 0.0
        %652 = vmatprep.subr.mxu0 0.0
        %653 = vmatpush1.xpose.msra.mxu0 0.0
        %654 = vmatprep.subr.mxu0 0.0
        %655 = vmatpush1.xpose.msra.mxu0 0.0
        %656 = vmatprep.subr.mxu0 0.0
        %657 = vmatpush1.xpose.msra.mxu0 0.0
        %658 = vmatprep.subr.mxu0 0.0
        %659 = vmatpush1.xpose.msra.mxu0 0.0
        %660 = vmatprep.subr.mxu0 0.0
        %661 = vmatpush1.xpose.msra.mxu0 0.0
        %662 = vmatprep.subr.mxu0 0.0
        %663 = vmatpush1.xpose.msra.mxu0 0.0
        %664 = vmatprep.subr.mxu0 0.0
        %665 = vmatpush1.xpose.msra.mxu0 0.0
        %666 = vmatprep.subr.mxu0 0.0
        %667 = vmatpush1.xpose.msra.mxu0 0.0
        %668 = vmatprep.subr.mxu0 0.0
        %669 = vmatpush1.xpose.msra.mxu0 0.0
        %670 = vmatprep.subr.mxu0 0.0
        %671 = vmatpush1.xpose.msra.mxu0 0.0
        %672 = vmatprep.subr.mxu0 0.0
        %673 = vmatpush1.xpose.msra.mxu0 0.0
        %674 = vmatprep.subr.mxu0 0.0
        %675 = vmatpush1.xpose.msra.mxu0 0.0
        %676 = vmatprep.subr.mxu0 0.0
        %677 = vmatpush1.xpose.msra.mxu0 0.0
        %678 = vmatprep.subr.mxu0 0.0
        %679 = vmatpush1.xpose.msra.mxu0 0.0
        %680 = vmatprep.subr.mxu0 0.0
        %681 = vmatpush1.xpose.msra.mxu0 0.0
        %682 = vmatprep.subr.mxu0 0.0
        %683 = vmatpush1.xpose.msra.mxu0 0.0
        %684 = vmatprep.subr.mxu0 0.0
        %685 = vmatpush1.xpose.msra.mxu0 0.0
        %686 = vmatprep.subr.mxu0 0.0
        %687 = vmatpush1.xpose.msra.mxu0 0.0
        %688 = vmatprep.subr.mxu0 0.0
        %689 = vmatpush1.xpose.msra.mxu0 0.0
        %690 = vmatprep.subr.mxu0 0.0
        %691 = vmatpush1.xpose.msra.mxu0 0.0
        %692 = vmatprep.subr.mxu0 0.0
        %693 = vmatpush1.xpose.msra.mxu0 0.0
        %694 = vmatprep.subr.mxu0 0.0
        %695 = vmatpush1.xpose.msra.mxu0 0.0
        %696 = vmatprep.subr.mxu0 0.0
        %697 = vmatpush1.xpose.msra.mxu0 0.0
        %698 = vmatprep.subr.mxu0 0.0
        %699 = vmatpush1.xpose.msra.mxu0 0.0
        %700 = vmatprep.subr.mxu0 0.0
        %701 = vmatpush1.xpose.msra.mxu0 0.0
        %702 = vmatprep.subr.mxu0 0.0
        %703 = vmatpush1.xpose.msra.mxu0 0.0
        %704 = vmatprep.subr.mxu0 0.0
        %705 = vmatpush1.xpose.msra.mxu0 0.0
        %706 = vmatprep.subr.mxu0 0.0
        %707 = vmatpush1.xpose.msra.mxu0 0.0
        %708 = vmatprep.mubr.f32.mxu0 0.0
        %709 = vmatmul.mubr.f32.gmra.mrb[0].mxu0 %v639
        %v710 = vpop.f32.mrb[0].mxu0
        %v711 = vadd.f32 0.0, %v710
        %v712 = vpop.f32.mrb[0].mxu0
        %713 = vdwg.mxu0
        %v714 = vld [vmem:[#allocation4] sm:$0xff]
        %v715 = vld [vmem:[#allocation5] sm:$0xff]
        %v716 = vsel %vm637, %v711, -inf
        %717 = vmax.xlane.f32.xlu0 %v716
        %v718 = vpop.xlane.xlu0 %717
        %v719 = vmax.f32 %v714, %v718
        %v720 = vsub.f32 %v714, %v719
        %v721 = vmul.f32 %v720, 1.442695
        %v722 = vpow.pop %v721
        %724 = vset.pattern.permute.xlu0 0
        %725 = vperm.xlu0 %724, %v719
        %v726 = vpop.permute.xlu0 %725
        %v728 = vsub.f32 %v711, %v726
        %v729 = vmul.f32 %v728, 1.442695
        %v730 = vpow.pop %v729
        %v731 = vmul.f32 %v722, %v715
        %v732 = vsel %vm637, %v730, 0.0
        %733 = vadd.xlane.f32.xlu0 %v732
        %v734 = vpop.xlane.xlu0 %733
        %v735 = vadd.f32 %v731, %v734
        %vm736 = vcmask 7168
        %737 = vst.msk [vmem:[#allocation5] sm:$0xff] %vm736, %v735
        %738 = vst.msk [vmem:[#allocation4] sm:$0xff] %vm736, %v719
        %v739 = vld [vmem:[#allocation3] sm:$0xff]
        %741 = vset.pattern.permute.xlu0 0
        %742 = vperm.xlu0 %741, %v722
        %v743 = vpop.permute.xlu0 %742
        %v745 = vmul.f32 %v743, %v739
        %746 = vrot.lane.b32.xlu0 %v633, 96
        %v747 = vpop.permute.xlu0 %746
        %v750 = vsel %vm637, %v730, 0
        %752 = vmatprep.subr.mxu0 0.0
        %753 = vmatpush1.msra.mxu0 %v747
        %754 = vmatprep.subr.mxu0 0.0
        %755 = vmatpush1.msra.mxu0 0.0
        %756 = vmatprep.subr.mxu0 0.0
        %757 = vmatpush1.msra.mxu0 0.0
        %758 = vmatprep.subr.mxu0 0.0
        %759 = vmatpush1.msra.mxu0 0.0
        %760 = vmatprep.subr.mxu0 0.0
        %761 = vmatpush1.msra.mxu0 0.0
        %762 = vmatprep.subr.mxu0 0.0
        %763 = vmatpush1.msra.mxu0 0.0
        %764 = vmatprep.subr.mxu0 0.0
        %765 = vmatpush1.msra.mxu0 0.0
        %766 = vmatprep.subr.mxu0 0.0
        %767 = vmatpush1.msra.mxu0 0.0
        %768 = vmatprep.subr.mxu0 0.0
        %769 = vmatpush1.msra.mxu0 0.0
        %770 = vmatprep.subr.mxu0 0.0
        %771 = vmatpush1.msra.mxu0 0.0
        %772 = vmatprep.subr.mxu0 0.0
        %773 = vmatpush1.msra.mxu0 0.0
        %774 = vmatprep.subr.mxu0 0.0
        %775 = vmatpush1.msra.mxu0 0.0
        %776 = vmatprep.subr.mxu0 0.0
        %777 = vmatpush1.msra.mxu0 0.0
        %778 = vmatprep.subr.mxu0 0.0
        %779 = vmatpush1.msra.mxu0 0.0
        %780 = vmatprep.subr.mxu0 0.0
        %781 = vmatpush1.msra.mxu0 0.0
        %782 = vmatprep.subr.mxu0 0.0
        %783 = vmatpush1.msra.mxu0 0.0
        %784 = vmatprep.subr.mxu0 0.0
        %785 = vmatpush1.msra.mxu0 0.0
        %786 = vmatprep.subr.mxu0 0.0
        %787 = vmatpush1.msra.mxu0 0.0
        %788 = vmatprep.subr.mxu0 0.0
        %789 = vmatpush1.msra.mxu0 0.0
        %790 = vmatprep.subr.mxu0 0.0
        %791 = vmatpush1.msra.mxu0 0.0
        %792 = vmatprep.subr.mxu0 0.0
        %793 = vmatpush1.msra.mxu0 0.0
        %794 = vmatprep.subr.mxu0 0.0
        %795 = vmatpush1.msra.mxu0 0.0
        %796 = vmatprep.subr.mxu0 0.0
        %797 = vmatpush1.msra.mxu0 0.0
        %798 = vmatprep.subr.mxu0 0.0
        %799 = vmatpush1.msra.mxu0 0.0
        %800 = vmatprep.subr.mxu0 0.0
        %801 = vmatpush1.msra.mxu0 0.0
        %802 = vmatprep.subr.mxu0 0.0
        %803 = vmatpush1.msra.mxu0 0.0
        %804 = vmatprep.subr.mxu0 0.0
        %805 = vmatpush1.msra.mxu0 0.0
        %806 = vmatprep.subr.mxu0 0.0
        %807 = vmatpush1.msra.mxu0 0.0
        %808 = vmatprep.subr.mxu0 0.0
        %809 = vmatpush1.msra.mxu0 0.0
        %810 = vmatprep.subr.mxu0 0.0
        %811 = vmatpush1.msra.mxu0 0.0
        %812 = vmatprep.subr.mxu0 0.0
        %813 = vmatpush1.msra.mxu0 0.0
        %814 = vmatprep.subr.mxu0 0.0
        %815 = vmatpush1.msra.mxu0 0.0
        %816 = vmatprep.mubr.f32.mxu0 0.0
        %817 = vmatmul.mubr.f32.gmra.mrb[0].mxu0 %v750
        %v818 = vpop.f32.mrb[0].mxu0
        %v819 = vadd.f32 0.0, %v818
        %v820 = vpop.f32.mrb[0].mxu0
        %821 = vdwg.mxu0
        %v822 = vadd.f32 %v745, %v819
        %823 = vst.msk [vmem:[#allocation3] sm:$0xff] %vm637, %v822
        %s824 = scalar_lea.vmem [#allocation2], 8
        %v825 = vld [vmem:[%s824] sm:$0xff]
        %826 = vrot.lane.b32.xlu0 %v633, 120
        %v827 = vpop.permute.xlu0 %826
        %v829 = vsel %vm637, %v825, 0
        %v831 = vsel %vm637, %v827, 0
        %833 = vmatprep.subr.mxu0 0.0
        %834 = vmatpush1.xpose.msra.mxu0 %v831
        %835 = vmatprep.subr.mxu0 0.0
        %836 = vmatpush1.xpose.msra.mxu0 0.0
        %837 = vmatprep.subr.mxu0 0.0
        %838 = vmatpush1.xpose.msra.mxu0 0.0
        %839 = vmatprep.subr.mxu0 0.0
        %840 = vmatpush1.xpose.msra.mxu0 0.0
        %841 = vmatprep.subr.mxu0 0.0
        %842 = vmatpush1.xpose.msra.mxu0 0.0
        %843 = vmatprep.subr.mxu0 0.0
        %844 = vmatpush1.xpose.msra.mxu0 0.0
        %845 = vmatprep.subr.mxu0 0.0
        %846 = vmatpush1.xpose.msra.mxu0 0.0
        %847 = vmatprep.subr.mxu0 0.0
        %848 = vmatpush1.xpose.msra.mxu0 0.0
        %849 = vmatprep.subr.mxu0 0.0
        %850 = vmatpush1.xpose.msra.mxu0 0.0
        %851 = vmatprep.subr.mxu0 0.0
        %852 = vmatpush1.xpose.msra.mxu0 0.0
        %853 = vmatprep.subr.mxu0 0.0
        %854 = vmatpush1.xpose.msra.mxu0 0.0
        %855 = vmatprep.subr.mxu0 0.0
        %856 = vmatpush1.xpose.msra.mxu0 0.0
        %857 = vmatprep.subr.mxu0 0.0
        %858 = vmatpush1.xpose.msra.mxu0 0.0
        %859 = vmatprep.subr.mxu0 0.0
        %860 = vmatpush1.xpose.msra.mxu0 0.0
        %861 = vmatprep.subr.mxu0 0.0
        %862 = vmatpush1.xpose.msra.mxu0 0.0
        %863 = vmatprep.subr.mxu0 0.0
        %864 = vmatpush1.xpose.msra.mxu0 0.0
        %865 = vmatprep.subr.mxu0 0.0
        %866 = vmatpush1.xpose.msra.mxu0 0.0
        %867 = vmatprep.subr.mxu0 0.0
        %868 = vmatpush1.xpose.msra.mxu0 0.0
        %869 = vmatprep.subr.mxu0 0.0
        %870 = vmatpush1.xpose.msra.mxu0 0.0
        %871 = vmatprep.subr.mxu0 0.0
        %872 = vmatpush1.xpose.msra.mxu0 0.0
        %873 = vmatprep.subr.mxu0 0.0
        %874 = vmatpush1.xpose.msra.mxu0 0.0
        %875 = vmatprep.subr.mxu0 0.0
        %876 = vmatpush1.xpose.msra.mxu0 0.0
        %877 = vmatprep.subr.mxu0 0.0
        %878 = vmatpush1.xpose.msra.mxu0 0.0
        %879 = vmatprep.subr.mxu0 0.0
        %880 = vmatpush1.xpose.msra.mxu0 0.0
        %881 = vmatprep.subr.mxu0 0.0
        %882 = vmatpush1.xpose.msra.mxu0 0.0
        %883 = vmatprep.subr.mxu0 0.0
        %884 = vmatpush1.xpose.msra.mxu0 0.0
        %885 = vmatprep.subr.mxu0 0.0
        %886 = vmatpush1.xpose.msra.mxu0 0.0
        %887 = vmatprep.subr.mxu0 0.0
        %888 = vmatpush1.xpose.msra.mxu0 0.0
        %889 = vmatprep.subr.mxu0 0.0
        %890 = vmatpush1.xpose.msra.mxu0 0.0
        %891 = vmatprep.subr.mxu0 0.0
        %892 = vmatpush1.xpose.msra.mxu0 0.0
        %893 = vmatprep.subr.mxu0 0.0
        %894 = vmatpush1.xpose.msra.mxu0 0.0
        %895 = vmatprep.subr.mxu0 0.0
        %896 = vmatpush1.xpose.msra.mxu0 0.0
        %897 = vmatprep.mubr.f32.mxu0 0.0
        %898 = vmatmul.mubr.f32.gmra.mrb[0].mxu0 %v829
        %v899 = vpop.f32.mrb[0].mxu0
        %v900 = vadd.f32 0.0, %v899
        %v901 = vpop.f32.mrb[0].mxu0
        %902 = vdwg.mxu0
        %s903 = scalar_lea.vmem [#allocation4], 8
        %v904 = vld [vmem:[%s903] sm:$0xff]
        %s905 = scalar_lea.vmem [#allocation5], 8
        %v906 = vld [vmem:[%s905] sm:$0xff]
        %v907 = vsel %vm637, %v900, -inf
        %908 = vmax.xlane.f32.xlu0 %v907
        %v909 = vpop.xlane.xlu0 %908
        %v910 = vmax.f32 %v904, %v909
        %v911 = vsub.f32 %v904, %v910
        %v912 = vmul.f32 %v911, 1.442695
        %v913 = vpow.pop %v912
        %915 = vset.pattern.permute.xlu0 0
        %916 = vperm.xlu0 %915, %v910
        %v917 = vpop.permute.xlu0 %916
        %v919 = vsub.f32 %v900, %v917
        %v920 = vmul.f32 %v919, 1.442695
        %v921 = vpow.pop %v920
        %v922 = vmul.f32 %v913, %v906
        %v923 = vsel %vm637, %v921, 0.0
        %924 = vadd.xlane.f32.xlu0 %v923
        %v925 = vpop.xlane.xlu0 %924
        %v926 = vadd.f32 %v922, %v925
        %927 = vst.msk [vmem:[%s905] sm:$0xff] %vm736, %v926
        %928 = vst.msk [vmem:[%s903] sm:$0xff] %vm736, %v910
        %s929 = scalar_lea.vmem [#allocation3], 8
        %v930 = vld [vmem:[%s929] sm:$0xff]
        %932 = vset.pattern.permute.xlu0 0
        %933 = vperm.xlu0 %932, %v913
        %v934 = vpop.permute.xlu0 %933
        %v936 = vmul.f32 %v934, %v930
        %937 = vrot.lane.b32.xlu0 %v633, 88
        %v938 = vpop.permute.xlu0 %937
        %v941 = vsel %vm637, %v921, 0
        %943 = vmatprep.subr.mxu0 0.0
        %944 = vmatpush1.msra.mxu0 %v938
        %945 = vmatprep.subr.mxu0 0.0
        %946 = vmatpush1.msra.mxu0 0.0
        %947 = vmatprep.subr.mxu0 0.0
        %948 = vmatpush1.msra.mxu0 0.0
        %949 = vmatprep.subr.mxu0 0.0
        %950 = vmatpush1.msra.mxu0 0.0
        %951 = vmatprep.subr.mxu0 0.0
        %952 = vmatpush1.msra.mxu0 0.0
        %953 = vmatprep.subr.mxu0 0.0
        %954 = vmatpush1.msra.mxu0 0.0
        %955 = vmatprep.subr.mxu0 0.0
        %956 = vmatpush1.msra.mxu0 0.0
        %957 = vmatprep.subr.mxu0 0.0
        %958 = vmatpush1.msra.mxu0 0.0
        %959 = vmatprep.subr.mxu0 0.0
        %960 = vmatpush1.msra.mxu0 0.0
        %961 = vmatprep.subr.mxu0 0.0
        %962 = vmatpush1.msra.mxu0 0.0
        %963 = vmatprep.subr.mxu0 0.0
        %964 = vmatpush1.msra.mxu0 0.0
        %965 = vmatprep.subr.mxu0 0.0
        %966 = vmatpush1.msra.mxu0 0.0
        %967 = vmatprep.subr.mxu0 0.0
        %968 = vmatpush1.msra.mxu0 0.0
        %969 = vmatprep.subr.mxu0 0.0
        %970 = vmatpush1.msra.mxu0 0.0
        %971 = vmatprep.subr.mxu0 0.0
        %972 = vmatpush1.msra.mxu0 0.0
        %973 = vmatprep.subr.mxu0 0.0
        %974 = vmatpush1.msra.mxu0 0.0
        %975 = vmatprep.subr.mxu0 0.0
        %976 = vmatpush1.msra.mxu0 0.0
        %977 = vmatprep.subr.mxu0 0.0
        %978 = vmatpush1.msra.mxu0 0.0
        %979 = vmatprep.subr.mxu0 0.0
        %980 = vmatpush1.msra.mxu0 0.0
        %981 = vmatprep.subr.mxu0 0.0
        %982 = vmatpush1.msra.mxu0 0.0
        %983 = vmatprep.subr.mxu0 0.0
        %984 = vmatpush1.msra.mxu0 0.0
        %985 = vmatprep.subr.mxu0 0.0
        %986 = vmatpush1.msra.mxu0 0.0
        %987 = vmatprep.subr.mxu0 0.0
        %988 = vmatpush1.msra.mxu0 0.0
        %989 = vmatprep.subr.mxu0 0.0
        %990 = vmatpush1.msra.mxu0 0.0
        %991 = vmatprep.subr.mxu0 0.0
        %992 = vmatpush1.msra.mxu0 0.0
        %993 = vmatprep.subr.mxu0 0.0
        %994 = vmatpush1.msra.mxu0 0.0
        %995 = vmatprep.subr.mxu0 0.0
        %996 = vmatpush1.msra.mxu0 0.0
        %997 = vmatprep.subr.mxu0 0.0
        %998 = vmatpush1.msra.mxu0 0.0
        %999 = vmatprep.subr.mxu0 0.0
        %1000 = vmatpush1.msra.mxu0 0.0
        %1001 = vmatprep.subr.mxu0 0.0
        %1002 = vmatpush1.msra.mxu0 0.0
        %1003 = vmatprep.subr.mxu0 0.0
        %1004 = vmatpush1.msra.mxu0 0.0
        %1005 = vmatprep.subr.mxu0 0.0
        %1006 = vmatpush1.msra.mxu0 0.0
        %1007 = vmatprep.mubr.f32.mxu0 0.0
        %1008 = vmatmul.mubr.f32.gmra.mrb[0].mxu0 %v941
        %v1009 = vpop.f32.mrb[0].mxu0
        %v1010 = vadd.f32 0.0, %v1009
        %v1011 = vpop.f32.mrb[0].mxu0
        %1012 = vdwg.mxu0
        %v1013 = vadd.f32 %v936, %v1010
        %1014 = vst.msk [vmem:[%s929] sm:$0xff] %vm637, %v1013
        %s1015 = scalar_lea.vmem [#allocation2], 16
        %v1016 = vld [vmem:[%s1015] sm:$0xff]
        %1017 = vrot.lane.b32.xlu0 %v633, 112
        %v1018 = vpop.permute.xlu0 %1017
        %v1020 = vsel %vm637, %v1016, 0
        %v1022 = vsel %vm637, %v1018, 0
        %1024 = vmatprep.subr.mxu0 0.0
        %1025 = vmatpush1.xpose.msra.mxu0 %v1022
        %1026 = vmatprep.subr.mxu0 0.0
        %1027 = vmatpush1.xpose.msra.mxu0 0.0
        %1028 = vmatprep.subr.mxu0 0.0
        %1029 = vmatpush1.xpose.msra.mxu0 0.0
        %1030 = vmatprep.subr.mxu0 0.0
        %1031 = vmatpush1.xpose.msra.mxu0 0.0
        %1032 = vmatprep.subr.mxu0 0.0
        %1033 = vmatpush1.xpose.msra.mxu0 0.0
        %1034 = vmatprep.subr.mxu0 0.0
        %1035 = vmatpush1.xpose.msra.mxu0 0.0
        %1036 = vmatprep.subr.mxu0 0.0
        %1037 = vmatpush1.xpose.msra.mxu0 0.0
        %1038 = vmatprep.subr.mxu0 0.0
        %1039 = vmatpush1.xpose.msra.mxu0 0.0
        %1040 = vmatprep.subr.mxu0 0.0
        %1041 = vmatpush1.xpose.msra.mxu0 0.0
        %1042 = vmatprep.subr.mxu0 0.0
        %1043 = vmatpush1.xpose.msra.mxu0 0.0
        %1044 = vmatprep.subr.mxu0 0.0
        %1045 = vmatpush1.xpose.msra.mxu0 0.0
        %1046 = vmatprep.subr.mxu0 0.0
        %1047 = vmatpush1.xpose.msra.mxu0 0.0
        %1048 = vmatprep.subr.mxu0 0.0
        %1049 = vmatpush1.xpose.msra.mxu0 0.0
        %1050 = vmatprep.subr.mxu0 0.0
        %1051 = vmatpush1.xpose.msra.mxu0 0.0
        %1052 = vmatprep.subr.mxu0 0.0
        %1053 = vmatpush1.xpose.msra.mxu0 0.0
        %1054 = vmatprep.subr.mxu0 0.0
        %1055 = vmatpush1.xpose.msra.mxu0 0.0
        %1056 = vmatprep.subr.mxu0 0.0
        %1057 = vmatpush1.xpose.msra.mxu0 0.0
        %1058 = vmatprep.subr.mxu0 0.0
        %1059 = vmatpush1.xpose.msra.mxu0 0.0
        %1060 = vmatprep.subr.mxu0 0.0
        %1061 = vmatpush1.xpose.msra.mxu0 0.0
        %1062 = vmatprep.subr.mxu0 0.0
        %1063 = vmatpush1.xpose.msra.mxu0 0.0
        %1064 = vmatprep.subr.mxu0 0.0
        %1065 = vmatpush1.xpose.msra.mxu0 0.0
        %1066 = vmatprep.subr.mxu0 0.0
        %1067 = vmatpush1.xpose.msra.mxu0 0.0
        %1068 = vmatprep.subr.mxu0 0.0
        %1069 = vmatpush1.xpose.msra.mxu0 0.0
        %1070 = vmatprep.subr.mxu0 0.0
        %1071 = vmatpush1.xpose.msra.mxu0 0.0
        %1072 = vmatprep.subr.mxu0 0.0
        %1073 = vmatpush1.xpose.msra.mxu0 0.0
        %1074 = vmatprep.subr.mxu0 0.0
        %1075 = vmatpush1.xpose.msra.mxu0 0.0
        %1076 = vmatprep.subr.mxu0 0.0
        %1077 = vmatpush1.xpose.msra.mxu0 0.0
        %1078 = vmatprep.subr.mxu0 0.0
        %1079 = vmatpush1.xpose.msra.mxu0 0.0
        %1080 = vmatprep.subr.mxu0 0.0
        %1081 = vmatpush1.xpose.msra.mxu0 0.0
        %1082 = vmatprep.subr.mxu0 0.0
        %1083 = vmatpush1.xpose.msra.mxu0 0.0
        %1084 = vmatprep.subr.mxu0 0.0
        %1085 = vmatpush1.xpose.msra.mxu0 0.0
        %1086 = vmatprep.subr.mxu0 0.0
        %1087 = vmatpush1.xpose.msra.mxu0 0.0
        %1088 = vmatprep.mubr.f32.mxu0 0.0
        %1089 = vmatmul.mubr.f32.gmra.mrb[0].mxu0 %v1020
        %v1090 = vpop.f32.mrb[0].mxu0
        %v1091 = vadd.f32 0.0, %v1090
        %v1092 = vpop.f32.mrb[0].mxu0
        %1093 = vdwg.mxu0
        %s1094 = scalar_lea.vmem [#allocation4], 16
        %v1095 = vld [vmem:[%s1094] sm:$0xff]
        %s1096 = scalar_lea.vmem [#allocation5], 16
        %v1097 = vld [vmem:[%s1096] sm:$0xff]
        %v1098 = vsel %vm637, %v1091, -inf
        %1099 = vmax.xlane.f32.xlu0 %v1098
        %v1100 = vpop.xlane.xlu0 %1099
        %v1101 = vmax.f32 %v1095, %v1100
        %v1102 = vsub.f32 %v1095, %v1101
        %v1103 = vmul.f32 %v1102, 1.442695
        %v1104 = vpow.pop %v1103
        %1106 = vset.pattern.permute.xlu0 0
        %1107 = vperm.xlu0 %1106, %v1101
        %v1108 = vpop.permute.xlu0 %1107
        %v1110 = vsub.f32 %v1091, %v1108
        %v1111 = vmul.f32 %v1110, 1.442695
        %v1112 = vpow.pop %v1111
        %v1113 = vmul.f32 %v1104, %v1097
        %v1114 = vsel %vm637, %v1112, 0.0
        %1115 = vadd.xlane.f32.xlu0 %v1114
        %v1116 = vpop.xlane.xlu0 %1115
        %v1117 = vadd.f32 %v1113, %v1116
        %1118 = vst.msk [vmem:[%s1096] sm:$0xff] %vm736, %v1117
        %1119 = vst.msk [vmem:[%s1094] sm:$0xff] %vm736, %v1101
        %s1120 = scalar_lea.vmem [#allocation3], 16
        %v1121 = vld [vmem:[%s1120] sm:$0xff]
        %1123 = vset.pattern.permute.xlu0 0
        %1124 = vperm.xlu0 %1123, %v1104
        %v1125 = vpop.permute.xlu0 %1124
        %v1127 = vmul.f32 %v1125, %v1121
        %1128 = vrot.lane.b32.xlu0 %v633, 80
        %v1129 = vpop.permute.xlu0 %1128
        %v1132 = vsel %vm637, %v1112, 0
        %1134 = vmatprep.subr.mxu0 0.0
        %1135 = vmatpush1.msra.mxu0 %v1129
        %1136 = vmatprep.subr.mxu0 0.0
        %1137 = vmatpush1.msra.mxu0 0.0
        %1138 = vmatprep.subr.mxu0 0.0
        %1139 = vmatpush1.msra.mxu0 0.0
        %1140 = vmatprep.subr.mxu0 0.0
        %1141 = vmatpush1.msra.mxu0 0.0
        %1142 = vmatprep.subr.mxu0 0.0
        %1143 = vmatpush1.msra.mxu0 0.0
        %1144 = vmatprep.subr.mxu0 0.0
        %1145 = vmatpush1.msra.mxu0 0.0
        %1146 = vmatprep.subr.mxu0 0.0
        %1147 = vmatpush1.msra.mxu0 0.0
        %1148 = vmatprep.subr.mxu0 0.0
        %1149 = vmatpush1.msra.mxu0 0.0
        %1150 = vmatprep.subr.mxu0 0.0
        %1151 = vmatpush1.msra.mxu0 0.0
        %1152 = vmatprep.subr.mxu0 0.0
        %1153 = vmatpush1.msra.mxu0 0.0
        %1154 = vmatprep.subr.mxu0 0.0
        %1155 = vmatpush1.msra.mxu0 0.0
        %1156 = vmatprep.subr.mxu0 0.0
        %1157 = vmatpush1.msra.mxu0 0.0
        %1158 = vmatprep.subr.mxu0 0.0
        %1159 = vmatpush1.msra.mxu0 0.0
        %1160 = vmatprep.subr.mxu0 0.0
        %1161 = vmatpush1.msra.mxu0 0.0
        %1162 = vmatprep.subr.mxu0 0.0
        %1163 = vmatpush1.msra.mxu0 0.0
        %1164 = vmatprep.subr.mxu0 0.0
        %1165 = vmatpush1.msra.mxu0 0.0
        %1166 = vmatprep.subr.mxu0 0.0
        %1167 = vmatpush1.msra.mxu0 0.0
        %1168 = vmatprep.subr.mxu0 0.0
        %1169 = vmatpush1.msra.mxu0 0.0
        %1170 = vmatprep.subr.mxu0 0.0
        %1171 = vmatpush1.msra.mxu0 0.0
        %1172 = vmatprep.subr.mxu0 0.0
        %1173 = vmatpush1.msra.mxu0 0.0
        %1174 = vmatprep.subr.mxu0 0.0
        %1175 = vmatpush1.msra.mxu0 0.0
        %1176 = vmatprep.subr.mxu0 0.0
        %1177 = vmatpush1.msra.mxu0 0.0
        %1178 = vmatprep.subr.mxu0 0.0
        %1179 = vmatpush1.msra.mxu0 0.0
        %1180 = vmatprep.subr.mxu0 0.0
        %1181 = vmatpush1.msra.mxu0 0.0
        %1182 = vmatprep.subr.mxu0 0.0
        %1183 = vmatpush1.msra.mxu0 0.0
        %1184 = vmatprep.subr.mxu0 0.0
        %1185 = vmatpush1.msra.mxu0 0.0
        %1186 = vmatprep.subr.mxu0 0.0
        %1187 = vmatpush1.msra.mxu0 0.0
        %1188 = vmatprep.subr.mxu0 0.0
        %1189 = vmatpush1.msra.mxu0 0.0
        %1190 = vmatprep.subr.mxu0 0.0
        %1191 = vmatpush1.msra.mxu0 0.0
        %1192 = vmatprep.subr.mxu0 0.0
        %1193 = vmatpush1.msra.mxu0 0.0
        %1194 = vmatprep.subr.mxu0 0.0
        %1195 = vmatpush1.msra.mxu0 0.0
        %1196 = vmatprep.subr.mxu0 0.0
        %1197 = vmatpush1.msra.mxu0 0.0
        %1198 = vmatprep.mubr.f32.mxu0 0.0
        %1199 = vmatmul.mubr.f32.gmra.mrb[0].mxu0 %v1132
        %v1200 = vpop.f32.mrb[0].mxu0
        %v1201 = vadd.f32 0.0, %v1200
        %v1202 = vpop.f32.mrb[0].mxu0
        %1203 = vdwg.mxu0
        %v1204 = vadd.f32 %v1127, %v1201
        %1205 = vst.msk [vmem:[%s1120] sm:$0xff] %vm637, %v1204
        %s1206 = scalar_lea.vmem [#allocation2], 24
        %v1207 = vld [vmem:[%s1206] sm:$0xff]
        %1208 = vrot.lane.b32.xlu0 %v633, 104
        %v1209 = vpop.permute.xlu0 %1208
        %v1211 = vsel %vm637, %v1207, 0
        %v1213 = vsel %vm637, %v1209, 0
        %1215 = vmatprep.subr.mxu0 0.0
        %1216 = vmatpush1.xpose.msra.mxu0 %v1213
        %1217 = vmatprep.subr.mxu0 0.0
        %1218 = vmatpush1.xpose.msra.mxu0 0.0
        %1219 = vmatprep.subr.mxu0 0.0
        %1220 = vmatpush1.xpose.msra.mxu0 0.0
        %1221 = vmatprep.subr.mxu0 0.0
        %1222 = vmatpush1.xpose.msra.mxu0 0.0
        %1223 = vmatprep.subr.mxu0 0.0
        %1224 = vmatpush1.xpose.msra.mxu0 0.0
        %1225 = vmatprep.subr.mxu0 0.0
        %1226 = vmatpush1.xpose.msra.mxu0 0.0
        %1227 = vmatprep.subr.mxu0 0.0
        %1228 = vmatpush1.xpose.msra.mxu0 0.0
        %1229 = vmatprep.subr.mxu0 0.0
        %1230 = vmatpush1.xpose.msra.mxu0 0.0
        %1231 = vmatprep.subr.mxu0 0.0
        %1232 = vmatpush1.xpose.msra.mxu0 0.0
        %1233 = vmatprep.subr.mxu0 0.0
        %1234 = vmatpush1.xpose.msra.mxu0 0.0
        %1235 = vmatprep.subr.mxu0 0.0
        %1236 = vmatpush1.xpose.msra.mxu0 0.0
        %1237 = vmatprep.subr.mxu0 0.0
        %1238 = vmatpush1.xpose.msra.mxu0 0.0
        %1239 = vmatprep.subr.mxu0 0.0
        %1240 = vmatpush1.xpose.msra.mxu0 0.0
        %1241 = vmatprep.subr.mxu0 0.0
        %1242 = vmatpush1.xpose.msra.mxu0 0.0
        %1243 = vmatprep.subr.mxu0 0.0
        %1244 = vmatpush1.xpose.msra.mxu0 0.0
        %1245 = vmatprep.subr.mxu0 0.0
        %1246 = vmatpush1.xpose.msra.mxu0 0.0
        %1247 = vmatprep.subr.mxu0 0.0
        %1248 = vmatpush1.xpose.msra.mxu0 0.0
        %1249 = vmatprep.subr.mxu0 0.0
        %1250 = vmatpush1.xpose.msra.mxu0 0.0
        %1251 = vmatprep.subr.mxu0 0.0
        %1252 = vmatpush1.xpose.msra.mxu0 0.0
        %1253 = vmatprep.subr.mxu0 0.0
        %1254 = vmatpush1.xpose.msra.mxu0 0.0
        %1255 = vmatprep.subr.mxu0 0.0
        %1256 = vmatpush1.xpose.msra.mxu0 0.0
        %1257 = vmatprep.subr.mxu0 0.0
        %1258 = vmatpush1.xpose.msra.mxu0 0.0
        %1259 = vmatprep.subr.mxu0 0.0
        %1260 = vmatpush1.xpose.msra.mxu0 0.0
        %1261 = vmatprep.subr.mxu0 0.0
        %1262 = vmatpush1.xpose.msra.mxu0 0.0
        %1263 = vmatprep.subr.mxu0 0.0
        %1264 = vmatpush1.xpose.msra.mxu0 0.0
        %1265 = vmatprep.subr.mxu0 0.0
        %1266 = vmatpush1.xpose.msra.mxu0 0.0
        %1267 = vmatprep.subr.mxu0 0.0
        %1268 = vmatpush1.xpose.msra.mxu0 0.0
        %1269 = vmatprep.subr.mxu0 0.0
        %1270 = vmatpush1.xpose.msra.mxu0 0.0
        %1271 = vmatprep.subr.mxu0 0.0
        %1272 = vmatpush1.xpose.msra.mxu0 0.0
        %1273 = vmatprep.subr.mxu0 0.0
        %1274 = vmatpush1.xpose.msra.mxu0 0.0
        %1275 = vmatprep.subr.mxu0 0.0
        %1276 = vmatpush1.xpose.msra.mxu0 0.0
        %1277 = vmatprep.subr.mxu0 0.0
        %1278 = vmatpush1.xpose.msra.mxu0 0.0
        %1279 = vmatprep.mubr.f32.mxu0 0.0
        %1280 = vmatmul.mubr.f32.gmra.mrb[0].mxu0 %v1211
        %v1281 = vpop.f32.mrb[0].mxu0
        %v1282 = vadd.f32 0.0, %v1281
        %v1283 = vpop.f32.mrb[0].mxu0
        %1284 = vdwg.mxu0
        %s1285 = scalar_lea.vmem [#allocation4], 24
        %v1286 = vld [vmem:[%s1285] sm:$0xff]
        %s1287 = scalar_lea.vmem [#allocation5], 24
        %v1288 = vld [vmem:[%s1287] sm:$0xff]
        %v1289 = vsel %vm637, %v1282, -inf
        %1290 = vmax.xlane.f32.xlu0 %v1289
        %v1291 = vpop.xlane.xlu0 %1290
        %v1292 = vmax.f32 %v1286, %v1291
        %v1293 = vsub.f32 %v1286, %v1292
        %v1294 = vmul.f32 %v1293, 1.442695
        %v1295 = vpow.pop %v1294
        %1297 = vset.pattern.permute.xlu0 0
        %1298 = vperm.xlu0 %1297, %v1292
        %v1299 = vpop.permute.xlu0 %1298
        %v1301 = vsub.f32 %v1282, %v1299
        %v1302 = vmul.f32 %v1301, 1.442695
        %v1303 = vpow.pop %v1302
        %v1304 = vmul.f32 %v1295, %v1288
        %v1305 = vsel %vm637, %v1303, 0.0
        %1306 = vadd.xlane.f32.xlu0 %v1305
        %v1307 = vpop.xlane.xlu0 %1306
        %v1308 = vadd.f32 %v1304, %v1307
        %1309 = vst.msk [vmem:[%s1287] sm:$0xff] %vm736, %v1308
        %1310 = vst.msk [vmem:[%s1285] sm:$0xff] %vm736, %v1292
        %s1311 = scalar_lea.vmem [#allocation3], 24
        %v1312 = vld [vmem:[%s1311] sm:$0xff]
        %1314 = vset.pattern.permute.xlu0 0
        %1315 = vperm.xlu0 %1314, %v1295
        %v1316 = vpop.permute.xlu0 %1315
        %v1318 = vmul.f32 %v1316, %v1312
        %1319 = vrot.lane.b32.xlu0 %v633, 72
        %v1320 = vpop.permute.xlu0 %1319
        %v1323 = vsel %vm637, %v1303, 0
        %1325 = vmatprep.subr.mxu0 0.0
        %1326 = vmatpush1.msra.mxu0 %v1320
        %1327 = vmatprep.subr.mxu0 0.0
        %1328 = vmatpush1.msra.mxu0 0.0
        %1329 = vmatprep.subr.mxu0 0.0
        %1330 = vmatpush1.msra.mxu0 0.0
        %1331 = vmatprep.subr.mxu0 0.0
        %1332 = vmatpush1.msra.mxu0 0.0
        %1333 = vmatprep.subr.mxu0 0.0
        %1334 = vmatpush1.msra.mxu0 0.0
        %1335 = vmatprep.subr.mxu0 0.0
        %1336 = vmatpush1.msra.mxu0 0.0
        %1337 = vmatprep.subr.mxu0 0.0
        %1338 = vmatpush1.msra.mxu0 0.0
        %1339 = vmatprep.subr.mxu0 0.0
        %1340 = vmatpush1.msra.mxu0 0.0
        %1341 = vmatprep.subr.mxu0 0.0
        %1342 = vmatpush1.msra.mxu0 0.0
        %1343 = vmatprep.subr.mxu0 0.0
        %1344 = vmatpush1.msra.mxu0 0.0
        %1345 = vmatprep.subr.mxu0 0.0
        %1346 = vmatpush1.msra.mxu0 0.0
        %1347 = vmatprep.subr.mxu0 0.0
        %1348 = vmatpush1.msra.mxu0 0.0
        %1349 = vmatprep.subr.mxu0 0.0
        %1350 = vmatpush1.msra.mxu0 0.0
        %1351 = vmatprep.subr.mxu0 0.0
        %1352 = vmatpush1.msra.mxu0 0.0
        %1353 = vmatprep.subr.mxu0 0.0
        %1354 = vmatpush1.msra.mxu0 0.0
        %1355 = vmatprep.subr.mxu0 0.0
        %1356 = vmatpush1.msra.mxu0 0.0
        %1357 = vmatprep.subr.mxu0 0.0
        %1358 = vmatpush1.msra.mxu0 0.0
        %1359 = vmatprep.subr.mxu0 0.0
        %1360 = vmatpush1.msra.mxu0 0.0
        %1361 = vmatprep.subr.mxu0 0.0
        %1362 = vmatpush1.msra.mxu0 0.0
        %1363 = vmatprep.subr.mxu0 0.0
        %1364 = vmatpush1.msra.mxu0 0.0
        %1365 = vmatprep.subr.mxu0 0.0
        %1366 = vmatpush1.msra.mxu0 0.0
        %1367 = vmatprep.subr.mxu0 0.0
        %1368 = vmatpush1.msra.mxu0 0.0
        %1369 = vmatprep.subr.mxu0 0.0
        %1370 = vmatpush1.msra.mxu0 0.0
        %1371 = vmatprep.subr.mxu0 0.0
        %1372 = vmatpush1.msra.mxu0 0.0
        %1373 = vmatprep.subr.mxu0 0.0
        %1374 = vmatpush1.msra.mxu0 0.0
        %1375 = vmatprep.subr.mxu0 0.0
        %1376 = vmatpush1.msra.mxu0 0.0
        %1377 = vmatprep.subr.mxu0 0.0
        %1378 = vmatpush1.msra.mxu0 0.0
        %1379 = vmatprep.subr.mxu0 0.0
        %1380 = vmatpush1.msra.mxu0 0.0
        %1381 = vmatprep.subr.mxu0 0.0
        %1382 = vmatpush1.msra.mxu0 0.0
        %1383 = vmatprep.subr.mxu0 0.0
        %1384 = vmatpush1.msra.mxu0 0.0
        %1385 = vmatprep.subr.mxu0 0.0
        %1386 = vmatpush1.msra.mxu0 0.0
        %1387 = vmatprep.subr.mxu0 0.0
        %1388 = vmatpush1.msra.mxu0 0.0
        %1389 = vmatprep.mubr.f32.mxu0 0.0
        %1390 = vmatmul.mubr.f32.gmra.mrb[0].mxu0 %v1323
        %v1391 = vpop.f32.mrb[0].mxu0
        %v1392 = vadd.f32 0.0, %v1391
        %v1393 = vpop.f32.mrb[0].mxu0
        %1394 = vdwg.mxu0
        %v1395 = vadd.f32 %v1318, %v1392
        %1396 = vst.msk [vmem:[%s1311] sm:$0xff] %vm637, %v1395
        // Predicated region
        $region77: #{tpu_custom_call.1} parent=51 // pred_check
          %p1397 = pneg %p428
        $region78: #{tpu_custom_call.1} parent=51 // pred_check_branch
          %1399 = sbr.rel (%p1397) target = $region80
        $region79: #{tpu_custom_call.1} parent=51 // pred_region
          %v1400 = vld [vmem:[#allocation5] sm:$0xff]
          %v1401 = vrcp.pop %v1400
          %v1402 = vld [vmem:[#allocation3] sm:$0xff]
          %1404 = vset.pattern.permute.xlu0 0
          %1405 = vperm.xlu0 %1404, %v1401
          %v1406 = vpop.permute.xlu0 %1405
          %v1408 = vmul.f32 %v1402, %v1406
          %v1409 = vld [vmem:[#allocation14] sm:$0xff]
          %v1410 = vld [vmem:[%s905] sm:$0xff]
          %v1411 = vrcp.pop %v1410
          %v1412 = vld [vmem:[%s929] sm:$0xff]
          %1414 = vset.pattern.permute.xlu0 0
          %1415 = vperm.xlu0 %1414, %v1411
          %v1416 = vpop.permute.xlu0 %1415
          %v1418 = vmul.f32 %v1412, %v1416
          %s1419 = scalar_lea.vmem [#allocation14], 8
          %v1420 = vld [vmem:[%s1419] sm:$0xff]
          %v1422 = vsel %vm637, %v1418, 0
          %1424 = vmatprep.subr.mxu0 0.0
          %1425 = vmatpush1.msra.mxu0 %v1420
          %1426 = vmatprep.subr.mxu0 0.0
          %1427 = vmatpush1.msra.mxu0 0.0
          %1428 = vmatprep.subr.mxu0 0.0
          %1429 = vmatpush1.msra.mxu0 0.0
          %1430 = vmatprep.subr.mxu0 0.0
          %1431 = vmatpush1.msra.mxu0 0.0
          %1432 = vmatprep.subr.mxu0 0.0
          %1433 = vmatpush1.msra.mxu0 0.0
          %1434 = vmatprep.subr.mxu0 0.0
          %1435 = vmatpush1.msra.mxu0 0.0
          %1436 = vmatprep.subr.mxu0 0.0
          %1437 = vmatpush1.msra.mxu0 0.0
          %1438 = vmatprep.subr.mxu0 0.0
          %1439 = vmatpush1.msra.mxu0 0.0
          %1440 = vmatprep.subr.mxu0 0.0
          %1441 = vmatpush1.msra.mxu0 0.0
          %1442 = vmatprep.subr.mxu0 0.0
          %1443 = vmatpush1.msra.mxu0 0.0
          %1444 = vmatprep.subr.mxu0 0.0
          %1445 = vmatpush1.msra.mxu0 0.0
          %1446 = vmatprep.subr.mxu0 0.0
          %1447 = vmatpush1.msra.mxu0 0.0
          %1448 = vmatprep.subr.mxu0 0.0
          %1449 = vmatpush1.msra.mxu0 0.0
          %1450 = vmatprep.subr.mxu0 0.0
          %1451 = vmatpush1.msra.mxu0 0.0
          %1452 = vmatprep.subr.mxu0 0.0
          %1453 = vmatpush1.msra.mxu0 0.0
          %1454 = vmatprep.subr.mxu0 0.0
          %1455 = vmatpush1.msra.mxu0 0.0
          %1456 = vmatprep.subr.mxu0 0.0
          %1457 = vmatpush1.msra.mxu0 0.0
          %1458 = vmatprep.subr.mxu0 0.0
          %1459 = vmatpush1.msra.mxu0 0.0
          %1460 = vmatprep.subr.mxu0 0.0
          %1461 = vmatpush1.msra.mxu0 0.0
          %1462 = vmatprep.subr.mxu0 0.0
          %1463 = vmatpush1.msra.mxu0 0.0
          %1464 = vmatprep.subr.mxu0 0.0
          %1465 = vmatpush1.msra.mxu0 0.0
          %1466 = vmatprep.subr.mxu0 0.0
          %1467 = vmatpush1.msra.mxu0 0.0
          %1468 = vmatprep.subr.mxu0 0.0
          %1469 = vmatpush1.msra.mxu0 0.0
          %1470 = vmatprep.subr.mxu0 0.0
          %1471 = vmatpush1.msra.mxu0 0.0
          %1472 = vmatprep.subr.mxu0 0.0
          %1473 = vmatpush1.msra.mxu0 0.0
          %1474 = vmatprep.subr.mxu0 0.0
          %1475 = vmatpush1.msra.mxu0 0.0
          %1476 = vmatprep.subr.mxu0 0.0
          %1477 = vmatpush1.msra.mxu0 0.0
          %1478 = vmatprep.subr.mxu0 0.0
          %1479 = vmatpush1.msra.mxu0 0.0
          %1480 = vmatprep.subr.mxu0 0.0
          %1481 = vmatpush1.msra.mxu0 0.0
          %1482 = vmatprep.subr.mxu0 0.0
          %1483 = vmatpush1.msra.mxu0 0.0
          %1484 = vmatprep.subr.mxu0 0.0
          %1485 = vmatpush1.msra.mxu0 0.0
          %1486 = vmatprep.subr.mxu0 0.0
          %1487 = vmatpush1.msra.mxu0 0.0
          %1488 = vmatprep.mubr.f32.mxu0 0.0
          %1489 = vmatmul.mubr.f32.gmra.mrb[0].mxu0 %v1422
          %v1490 = vpop.f32.mrb[0].mxu0
          %v1491 = vadd.f32 0.0, %v1490
          %v1492 = vpop.f32.mrb[0].mxu0
          %1493 = vdwg.mxu0
          %v1495 = vsel %vm637, %v1408, 0
          %1497 = vmatprep.subr.mxu0 0.0
          %1498 = vmatpush1.msra.mxu0 %v1409
          %1499 = vmatprep.subr.mxu0 0.0
          %1500 = vmatpush1.msra.mxu0 0.0
          %1501 = vmatprep.subr.mxu0 0.0
          %1502 = vmatpush1.msra.mxu0 0.0
          %1503 = vmatprep.subr.mxu0 0.0
          %1504 = vmatpush1.msra.mxu0 0.0
          %1505 = vmatprep.subr.mxu0 0.0
          %1506 = vmatpush1.msra.mxu0 0.0
          %1507 = vmatprep.subr.mxu0 0.0
          %1508 = vmatpush1.msra.mxu0 0.0
          %1509 = vmatprep.subr.mxu0 0.0
          %1510 = vmatpush1.msra.mxu0 0.0
          %1511 = vmatprep.subr.mxu0 0.0
          %1512 = vmatpush1.msra.mxu0 0.0
          %1513 = vmatprep.subr.mxu0 0.0
          %1514 = vmatpush1.msra.mxu0 0.0
          %1515 = vmatprep.subr.mxu0 0.0
          %1516 = vmatpush1.msra.mxu0 0.0
          %1517 = vmatprep.subr.mxu0 0.0
          %1518 = vmatpush1.msra.mxu0 0.0
          %1519 = vmatprep.subr.mxu0 0.0
          %1520 = vmatpush1.msra.mxu0 0.0
          %1521 = vmatprep.subr.mxu0 0.0
          %1522 = vmatpush1.msra.mxu0 0.0
          %1523 = vmatprep.subr.mxu0 0.0
          %1524 = vmatpush1.msra.mxu0 0.0
          %1525 = vmatprep.subr.mxu0 0.0
          %1526 = vmatpush1.msra.mxu0 0.0
          %1527 = vmatprep.subr.mxu0 0.0
          %1528 = vmatpush1.msra.mxu0 0.0
          %1529 = vmatprep.subr.mxu0 0.0
          %1530 = vmatpush1.msra.mxu0 0.0
          %1531 = vmatprep.subr.mxu0 0.0
          %1532 = vmatpush1.msra.mxu0 0.0
          %1533 = vmatprep.subr.mxu0 0.0
          %1534 = vmatpush1.msra.mxu0 0.0
          %1535 = vmatprep.subr.mxu0 0.0
          %1536 = vmatpush1.msra.mxu0 0.0
          %1537 = vmatprep.subr.mxu0 0.0
          %1538 = vmatpush1.msra.mxu0 0.0
          %1539 = vmatprep.subr.mxu0 0.0
          %1540 = vmatpush1.msra.mxu0 0.0
          %1541 = vmatprep.subr.mxu0 0.0
          %1542 = vmatpush1.msra.mxu0 0.0
          %1543 = vmatprep.subr.mxu0 0.0
          %1544 = vmatpush1.msra.mxu0 0.0
          %1545 = vmatprep.subr.mxu0 0.0
          %1546 = vmatpush1.msra.mxu0 0.0
          %1547 = vmatprep.subr.mxu0 0.0
          %1548 = vmatpush1.msra.mxu0 0.0
          %1549 = vmatprep.subr.mxu0 0.0
          %1550 = vmatpush1.msra.mxu0 0.0
          %1551 = vmatprep.subr.mxu0 0.0
          %1552 = vmatpush1.msra.mxu0 0.0
          %1553 = vmatprep.subr.mxu0 0.0
          %1554 = vmatpush1.msra.mxu0 0.0
          %1555 = vmatprep.subr.mxu0 0.0
          %1556 = vmatpush1.msra.mxu0 0.0
          %1557 = vmatprep.subr.mxu0 0.0
          %1558 = vmatpush1.msra.mxu0 0.0
          %1559 = vmatprep.subr.mxu0 0.0
          %1560 = vmatpush1.msra.mxu0 0.0
          %1561 = vmatprep.mubr.f32.mxu0 0.0
          %1562 = vmatmul.mubr.f32.gmra.mrb[0].mxu0 %v1495
          %v1563 = vpop.f32.mrb[0].mxu0
          %v1564 = vadd.f32 %v1491, %v1563
          %v1565 = vpop.f32.mrb[0].mxu0
          %1566 = vdwg.mxu0
          %v1567 = vld [vmem:[%s1096] sm:$0xff]
          %v1568 = vrcp.pop %v1567
          %v1569 = vld [vmem:[%s1120] sm:$0xff]
          %1571 = vset.pattern.permute.xlu0 0
          %1572 = vperm.xlu0 %1571, %v1568
          %v1573 = vpop.permute.xlu0 %1572
          %v1575 = vmul.f32 %v1569, %v1573
          %s1576 = scalar_lea.vmem [#allocation14], 16
          %v1577 = vld [vmem:[%s1576] sm:$0xff]
          %v1579 = vsel %vm637, %v1575, 0
          %1581 = vmatprep.subr.mxu0 0.0
          %1582 = vmatpush1.msra.mxu0 %v1577
          %1583 = vmatprep.subr.mxu0 0.0
          %1584 = vmatpush1.msra.mxu0 0.0
          %1585 = vmatprep.subr.mxu0 0.0
          %1586 = vmatpush1.msra.mxu0 0.0
          %1587 = vmatprep.subr.mxu0 0.0
          %1588 = vmatpush1.msra.mxu0 0.0
          %1589 = vmatprep.subr.mxu0 0.0
          %1590 = vmatpush1.msra.mxu0 0.0
          %1591 = vmatprep.subr.mxu0 0.0
          %1592 = vmatpush1.msra.mxu0 0.0
          %1593 = vmatprep.subr.mxu0 0.0
          %1594 = vmatpush1.msra.mxu0 0.0
          %1595 = vmatprep.subr.mxu0 0.0
          %1596 = vmatpush1.msra.mxu0 0.0
          %1597 = vmatprep.subr.mxu0 0.0
          %1598 = vmatpush1.msra.mxu0 0.0
          %1599 = vmatprep.subr.mxu0 0.0
          %1600 = vmatpush1.msra.mxu0 0.0
          %1601 = vmatprep.subr.mxu0 0.0
          %1602 = vmatpush1.msra.mxu0 0.0
          %1603 = vmatprep.subr.mxu0 0.0
          %1604 = vmatpush1.msra.mxu0 0.0
          %1605 = vmatprep.subr.mxu0 0.0
          %1606 = vmatpush1.msra.mxu0 0.0
          %1607 = vmatprep.subr.mxu0 0.0
          %1608 = vmatpush1.msra.mxu0 0.0
          %1609 = vmatprep.subr.mxu0 0.0
          %1610 = vmatpush1.msra.mxu0 0.0
          %1611 = vmatprep.subr.mxu0 0.0
          %1612 = vmatpush1.msra.mxu0 0.0
          %1613 = vmatprep.subr.mxu0 0.0
          %1614 = vmatpush1.msra.mxu0 0.0
          %1615 = vmatprep.subr.mxu0 0.0
          %1616 = vmatpush1.msra.mxu0 0.0
          %1617 = vmatprep.subr.mxu0 0.0
          %1618 = vmatpush1.msra.mxu0 0.0
          %1619 = vmatprep.subr.mxu0 0.0
          %1620 = vmatpush1.msra.mxu0 0.0
          %1621 = vmatprep.subr.mxu0 0.0
          %1622 = vmatpush1.msra.mxu0 0.0
          %1623 = vmatprep.subr.mxu0 0.0
          %1624 = vmatpush1.msra.mxu0 0.0
          %1625 = vmatprep.subr.mxu0 0.0
          %1626 = vmatpush1.msra.mxu0 0.0
          %1627 = vmatprep.subr.mxu0 0.0
          %1628 = vmatpush1.msra.mxu0 0.0
          %1629 = vmatprep.subr.mxu0 0.0
          %1630 = vmatpush1.msra.mxu0 0.0
          %1631 = vmatprep.subr.mxu0 0.0
          %1632 = vmatpush1.msra.mxu0 0.0
          %1633 = vmatprep.subr.mxu0 0.0
          %1634 = vmatpush1.msra.mxu0 0.0
          %1635 = vmatprep.subr.mxu0 0.0
          %1636 = vmatpush1.msra.mxu0 0.0
          %1637 = vmatprep.subr.mxu0 0.0
          %1638 = vmatpush1.msra.mxu0 0.0
          %1639 = vmatprep.subr.mxu0 0.0
          %1640 = vmatpush1.msra.mxu0 0.0
          %1641 = vmatprep.subr.mxu0 0.0
          %1642 = vmatpush1.msra.mxu0 0.0
          %1643 = vmatprep.subr.mxu0 0.0
          %1644 = vmatpush1.msra.mxu0 0.0
          %1645 = vmatprep.mubr.f32.mxu0 0.0
          %1646 = vmatmul.mubr.f32.gmra.mrb[0].mxu0 %v1579
          %v1647 = vpop.f32.mrb[0].mxu0
          %v1648 = vadd.f32 0.0, %v1647
          %v1649 = vpop.f32.mrb[0].mxu0
          %1650 = vdwg.mxu0
          %v1651 = vadd.f32 %v1564, %v1648
          %v1652 = vld [vmem:[%s1287] sm:$0xff]
          %v1653 = vrcp.pop %v1652
          %v1654 = vld [vmem:[%s1311] sm:$0xff]
          %1656 = vset.pattern.permute.xlu0 0
          %1657 = vperm.xlu0 %1656, %v1653
          %v1658 = vpop.permute.xlu0 %1657
          %v1660 = vmul.f32 %v1654, %v1658
          %s1661 = scalar_lea.vmem [#allocation14], 24
          %v1662 = vld [vmem:[%s1661] sm:$0xff]
          %v1664 = vsel %vm637, %v1660, 0
          %1666 = vmatprep.subr.mxu0 0.0
          %1667 = vmatpush1.msra.mxu0 %v1662
          %1668 = vmatprep.subr.mxu0 0.0
          %1669 = vmatpush1.msra.mxu0 0.0
          %1670 = vmatprep.subr.mxu0 0.0
          %1671 = vmatpush1.msra.mxu0 0.0
          %1672 = vmatprep.subr.mxu0 0.0
          %1673 = vmatpush1.msra.mxu0 0.0
          %1674 = vmatprep.subr.mxu0 0.0
          %1675 = vmatpush1.msra.mxu0 0.0
          %1676 = vmatprep.subr.mxu0 0.0
          %1677 = vmatpush1.msra.mxu0 0.0
          %1678 = vmatprep.subr.mxu0 0.0
          %1679 = vmatpush1.msra.mxu0 0.0
          %1680 = vmatprep.subr.mxu0 0.0
          %1681 = vmatpush1.msra.mxu0 0.0
          %1682 = vmatprep.subr.mxu0 0.0
          %1683 = vmatpush1.msra.mxu0 0.0
          %1684 = vmatprep.subr.mxu0 0.0
          %1685 = vmatpush1.msra.mxu0 0.0
          %1686 = vmatprep.subr.mxu0 0.0
          %1687 = vmatpush1.msra.mxu0 0.0
          %1688 = vmatprep.subr.mxu0 0.0
          %1689 = vmatpush1.msra.mxu0 0.0
          %1690 = vmatprep.subr.mxu0 0.0
          %1691 = vmatpush1.msra.mxu0 0.0
          %1692 = vmatprep.subr.mxu0 0.0
          %1693 = vmatpush1.msra.mxu0 0.0
          %1694 = vmatprep.subr.mxu0 0.0
          %1695 = vmatpush1.msra.mxu0 0.0
          %1696 = vmatprep.subr.mxu0 0.0
          %1697 = vmatpush1.msra.mxu0 0.0
          %1698 = vmatprep.subr.mxu0 0.0
          %1699 = vmatpush1.msra.mxu0 0.0
          %1700 = vmatprep.subr.mxu0 0.0
          %1701 = vmatpush1.msra.mxu0 0.0
          %1702 = vmatprep.subr.mxu0 0.0
          %1703 = vmatpush1.msra.mxu0 0.0
          %1704 = vmatprep.subr.mxu0 0.0
          %1705 = vmatpush1.msra.mxu0 0.0
          %1706 = vmatprep.subr.mxu0 0.0
          %1707 = vmatpush1.msra.mxu0 0.0
          %1708 = vmatprep.subr.mxu0 0.0
          %1709 = vmatpush1.msra.mxu0 0.0
          %1710 = vmatprep.subr.mxu0 0.0
          %1711 = vmatpush1.msra.mxu0 0.0
          %1712 = vmatprep.subr.mxu0 0.0
          %1713 = vmatpush1.msra.mxu0 0.0
          %1714 = vmatprep.subr.mxu0 0.0
          %1715 = vmatpush1.msra.mxu0 0.0
          %1716 = vmatprep.subr.mxu0 0.0
          %1717 = vmatpush1.msra.mxu0 0.0
          %1718 = vmatprep.subr.mxu0 0.0
          %1719 = vmatpush1.msra.mxu0 0.0
          %1720 = vmatprep.subr.mxu0 0.0
          %1721 = vmatpush1.msra.mxu0 0.0
          %1722 = vmatprep.subr.mxu0 0.0
          %1723 = vmatpush1.msra.mxu0 0.0
          %1724 = vmatprep.subr.mxu0 0.0
          %1725 = vmatpush1.msra.mxu0 0.0
          %1726 = vmatprep.subr.mxu0 0.0
          %1727 = vmatpush1.msra.mxu0 0.0
          %1728 = vmatprep.subr.mxu0 0.0
          %1729 = vmatpush1.msra.mxu0 0.0
          %1730 = vmatprep.mubr.f32.mxu0 0.0
          %1731 = vmatmul.mubr.f32.gmra.mrb[0].mxu0 %v1664
          %v1732 = vpop.f32.mrb[0].mxu0
          %v1733 = vadd.f32 0.0, %v1732
          %v1734 = vpop.f32.mrb[0].mxu0
          %1735 = vdwg.mxu0
          %v1736 = vadd.f32 %v1651, %v1733
          %v1737 = vld [vmem:[%s7] sm:$0x1]
          %v1739 = vlaneseq
          %v1740 = vshrl.u32 %v1739, 7
          %v1741 = vsub.s32 0, %v1740
          %v1742 = vrot.slane %v1737, %v1741
          %v1744 = vadd.f32 %v1736, %v1742
          %1745 = vst.msk [vmem:[%s427] sm:$0xff] %vm562, %v1744
        $region80: #{tpu_custom_call.1} parent=51 // pred_fallthru
          _
        %s1746 = sand.u32 %s240, 1
        %s1747 = scalar_lea.sflag [#allocation8], %s1746
        %s1748 = sand.u32 %s240, 1
        %s1749 = smul.addr %s1748, 8
        %s1750 = scalar_lea.vmem [#allocation15], %s1749
        // Predicated region
        $region81: #{tpu_custom_call.1} parent=51 // pred_check
          %p1751 = pneg %p250
        $region82: #{tpu_custom_call.1} parent=51 // pred_check_branch
          %1753 = sbr.rel (%p1751) target = $region84
        $region83: #{tpu_custom_call.1} parent=51 // pred_region
          %s1755 = ssub.s32 128, 128
          %1756 = vsyncadd %s1747, %s1755
          %s1757 = sadd.s32 %s35, %s34
          %s1758 = smul.addr %s1757, 128
          %s1759 = scalar_lea.hbm %s8, %s1758
          %s1761 = sshll.u32 %s1750, 4
          %s1762 = int_to_ptr.vmem [resolvable:$true] %s1761
          %1764 = dma.vmem_to_hbm [thread:$0]  %s1762, 128, %s1759, %s1747
        $region84: #{tpu_custom_call.1} parent=51 // pred_fallthru
          _
      $region52: #{tpu_custom_call.1} parent=5 // pred_fallthru
        _
      %p1765 = scmp.le.s32.totalorder 2, %s24
      // Predicated region
      $region85: #{tpu_custom_call.1} parent=5 // pred_check
        %p1766 = pneg %p1765
      $region86: #{tpu_custom_call.1} parent=5 // pred_check_branch
        %1768 = sbr.rel (%p1766) target = $region88
      $region87: #{tpu_custom_call.1} parent=5 // pred_region
        %s1769 = ssub.s32 %s24, 2
        // Predicated region
        $region89: #{tpu_custom_call.1} parent=87 // pred_check
          %p1770 = pneg %p256
        $region90: #{tpu_custom_call.1} parent=87 // pred_check_branch
          %1772 = sbr.rel (%p1770) target = $region92
        $region91: #{tpu_custom_call.1} parent=87 // pred_region
          %s1773 = sand.u32 %s241, 1
          %s1774 = scalar_lea.sflag [#allocation8], %s1773
          %s1775 = sand.u32 %s241, 1
          %s1776 = smul.addr %s1775, 8
          %s1777 = scalar_lea.vmem [#allocation15], %s1776
          %1778 = dma.done %s1774, 128
        $region92: #{tpu_custom_call.1} parent=87 // pred_fallthru
          _
      $region88: #{tpu_custom_call.1} parent=5 // pred_fallthru
        _
    $region6: #{tpu_custom_call.1} parent=1 // loop_footer
      %s28 = sadd.s32 1, %s24
    $region7: #{tpu_custom_call.1} parent=1 // loop_footer_branch
      %23 = sbr.rel target = $region3
    $region8: #{tpu_custom_call.1} parent=1 // loop_exit
      _
    %1779 = vsyncpa [#allocation7], 1
    %s1780 = scalar_lea.sflag [#allocation7], 1
    %1781 = vsyncpa %s1780, 1
    %1782 = vsyncpa [#allocation10], 1
    %s1783 = scalar_lea.sflag [#allocation10], 1
    %1784 = vsyncpa %s1783, 1
    %1785 = vsyncpa [#allocation13], 1
    %1786 = vsyncpa [#allocation8], 1
    %s1787 = scalar_lea.sflag [#allocation8], 1
    %1788 = vsyncpa %s1787, 1

</llo_original>
